<compile_context>
chip_gen: v5e
topology: v5e:2x2
jax: 0.10.0
libtpu: 0.0.40
codegen_flags: <defaults>
</compile_context>

<pallas_src>
import jax
import jax.numpy as jnp
from jax.experimental import pallas as pl
from jax.experimental.pallas import tpu as pltpu


def _round_up(x, m):
    return (x + m - 1) // m * m


def _vmem_estimate(T, Bt, V_pad, D, cd):
    """Rough peak VMEM bytes for one grid step (lane padding to 128 included)."""
    L = lambda c: _round_up(c, 128)
    est = 0
    est += 2 * T * Bt * 4                        # token block (int32), double-buffered
    est += 2 * Bt * 128 * cd                     # output block, double-buffered
    # constant weights / biases (double-buffered by the default pipeline)
    w_bytes = (V_pad * L(D) + 3 * D * L(32) + 3 * 32 * L(64)
               + 3 * 64 * 128 + 128 * 128) * cd
    w_bytes += (L(32) + L(64) + 128 + 128) * 8 * 4   # (1,C) f32 biases pad to 8 sublanes
    est += 2 * w_bytes
    # live intermediates (worst simultaneous set is around the gather + conv1)
    est += T * Bt * L(V_pad) * cd                # one-hot gather matrix
    est += T * Bt * L(D) * cd                    # x (embeddings)
    est += 3 * T * Bt * L(D) * cd                # three shifted conv taps
    est += T * Bt * 128 * 4                      # f32 conv accumulator (Cout lane-padded)
    est += (T // 2) * Bt * 128 * cd              # pooled activations / later layers
    return est


# ------------------------------- kernel -------------------------------------

def cnn_kernel(tok_ref, emb_ref, w1_ref, b1_ref, w2_ref, b2_ref, w3_ref, b3_ref,
               wfc_ref, bfc_ref, o_ref):
    # tok_ref: (T, Bt) int32 time-major token block.
    # emb_ref: (V_pad, D) compute dtype.
    # w*_ref:  (3, Cin, Cout) compute dtype (tap k multiplies x[t + k - 1]).
    # b*_ref:  (1, Cout) f32.  wfc_ref: (128, Kp) compute dtype.  bfc_ref: (1, Kp) f32.
    cdt = emb_ref.dtype
    T, Bt = tok_ref.shape
    V_pad, D = emb_ref.shape

    # ---- fused embedding gather: one-hot (T*Bt, V_pad) @ (V_pad, D) on the MXU ----
    tok = tok_ref[...]                                            # (T, Bt) int32
    iota = jax.lax.broadcasted_iota(jnp.int32, (T, Bt, V_pad), 2)
    onehot = jnp.where(tok[:, :, None] == iota,
                       jnp.ones((), cdt), jnp.zeros((), cdt))     # (T, Bt, V_pad)
    x = jnp.dot(onehot.reshape(T * Bt, V_pad), emb_ref[...],
                preferred_element_type=jnp.float32)
    x = x.astype(cdt).reshape(T, Bt, D)                           # (T, Bt, D)

    def conv_relu(x, w_ref, b_ref):
        # Same-padding conv1d as 3 accumulated tap matmuls (no materialized im2col).
        # Time shifts are leading-axis slices: never touch the tiled sublane/lane dims.
        Tn, Bn, Cin = x.shape
        z = jnp.zeros_like(x[:1])
        xm1 = jnp.concatenate([z, x[:-1]], axis=0).reshape(Tn * Bn, Cin)   # x[t-1]
        x0 = x.reshape(Tn * Bn, Cin)                                       # x[t]
        xp1 = jnp.concatenate([x[1:], z], axis=0).reshape(Tn * Bn, Cin)    # x[t+1]
        w = w_ref[...]                                                     # (3, Cin, Cout)
        y = jnp.dot(xm1, w[0], preferred_element_type=jnp.float32)
        y = y + jnp.dot(x0, w[1], preferred_element_type=jnp.float32)
        y = y + jnp.dot(xp1, w[2], preferred_element_type=jnp.float32)
        y = jnp.maximum(y + b_ref[...], 0.0)
        # Downcast right after bias+ReLU: pooling / global max run in compute dtype.
        return y.astype(cdt).reshape(Tn, Bn, -1)

    def pool2(y):
        # MaxPool1d(2) along time (leading axis): reshape + VPU max, no matmuls.
        Tn, Bn, C = y.shape
        return jnp.max(y.reshape(Tn // 2, 2, Bn, C), axis=1)

    y = conv_relu(x, w1_ref, b1_ref)        # (T,   Bt, 32)
    y = pool2(y)                            # (T/2, Bt, 32)
    y = conv_relu(y, w2_ref, b2_ref)        # (T/2, Bt, 64)
    y = pool2(y)                            # (T/4, Bt, 64)
    y = conv_relu(y, w3_ref, b3_ref)        # (T/4, Bt, 128)
    m = jnp.max(y, axis=0)                  # (Bt, 128) global max over time
    o_ref[...] = (jnp.dot(m, wfc_ref[...], preferred_element_type=jnp.float32)
                  + bfc_ref[...]).astype(o_ref.dtype)             # lane-dense (Bt, Kp)


# ------------------------------- wrapper ------------------------------------

def cnn_forward(tokens, params, *, compute_dtype=jnp.bfloat16, block_b=128):
    """tokens: (B, T) int32.  Returns (B, K) float32 logits."""
    B, T = tokens.shape
    V, D = params["embed"].shape
    K = params["bfc"].shape[-1]
    assert T % 4 == 0, "two MaxPool1d(2) layers require T divisible by 4"

    cd = jnp.dtype(compute_dtype).itemsize
    V_pad = _round_up(V, 128)        # contraction dim of the one-hot gather matmul

    # ---- VMEM-budget-driven batch tile (48 MiB budget: safe on v7x's 64 MiB) ----
    budget = 48 * (1 << 20)
    block_b = max(128, (block_b // 128) * 128)
    if B <= block_b:
        Bt = _round_up(B, 16)        # 16 rows/vreg for bf16 keeps reshapes tile-aligned
        B_pad = Bt                   # grid = 1 for small batches
    else:
        Bt = block_b                 # multiple of 128 -> lane-aligned token blocks
        while Bt > 128 and _vmem_estimate(T, Bt, V_pad, D, cd) > budget:
            Bt -= 128
        B_pad = _round_up(B, Bt)     # grid >= 2 for B > block_b (both v7x TensorCores)

    vmem_limit = int(min(max(_vmem_estimate(T, Bt, V_pad, D, cd) * 5 // 4,
                             32 * (1 << 20)), 60 * (1 << 20)))

    # Tokens time-major (T, B_pad); padded columns use token id 0, sliced away below.
    tok = jnp.pad(tokens.T.astype(jnp.int32), ((0, 0), (0, B_pad - B)))

    # Host-side weight prep (tiny, one-time).
    embed = jnp.pad(params["embed"], ((0, V_pad - V), (0, 0))).astype(compute_dtype)
    w1 = params["w1"].astype(compute_dtype)
    w2 = params["w2"].astype(compute_dtype)
    w3 = params["w3"].astype(compute_dtype)
    Kp = _round_up(max(K, 128), 128)
    wfc = jnp.pad(params["wfc"], ((0, 0), (0, Kp - K))).astype(compute_dtype)
    bfc = jnp.pad(params["bfc"], ((0, 0), (0, Kp - K))).astype(jnp.float32)

    def full_spec(shape):
        n = len(shape)
        return pl.BlockSpec(shape, lambda b: (0,) * n)

    out = pl.pallas_call(
        cnn_kernel,
        out_shape=jax.ShapeDtypeStruct((B_pad, Kp), compute_dtype),
        grid=(B_pad // Bt,),
        in_specs=[
            pl.BlockSpec((T, Bt), lambda b: (0, b)),   # token ids (only per-step stream)
            full_spec((V_pad, D)),
            full_spec((3, D, 32)), full_spec((1, 32)),
            full_spec((3, 32, 64)), full_spec((1, 64)),
            full_spec((3, 64, 128)), full_spec((1, 128)),
            full_spec((128, Kp)), full_spec((1, Kp)),
        ],
        out_specs=pl.BlockSpec((Bt, Kp), lambda b: (b, 0)),
        compiler_params=pltpu.CompilerParams(
            dimension_semantics=("parallel",),
            vmem_limit_bytes=vmem_limit),
    )(tok, embed, w1, params["b1"], w2, params["b2"], w3, params["b3"], wfc, bfc)

    return out[:B, :K].astype(jnp.float32)


# --------------------------- deterministic params ----------------------------

def init_params(key, V, D, K):
    ks = jax.random.split(key, 9)
    s = 0.1
    return {
        "embed": s * jax.random.normal(ks[0], (V, D), jnp.float32),
        # conv weights stored as (k, Cin, Cout) == PyTorch (Cout, Cin, k) transposed;
        # tap k multiplies x[t + k - 1] (same-padding conv).
        "w1": s * jax.random.normal(ks[1], (3, D, 32), jnp.float32),
        "b1": s * jax.random.normal(ks[2], (1, 32), jnp.float32),
        "w2": s * jax.random.normal(ks[3], (3, 32, 64), jnp.float32),
        "b2": s * jax.random.normal(ks[4], (1, 64), jnp.float32),
        "w3": s * jax.random.normal(ks[5], (3, 64, 128), jnp.float32),
        "b3": s * jax.random.normal(ks[6], (1, 128), jnp.float32),
        "wfc": s * jax.random.normal(ks[7], (128, K), jnp.float32),
        "bfc": s * jax.random.normal(ks[8], (1, K), jnp.float32),
    }


# ---------------------------- pure-JAX reference -----------------------------

def reference_forward(tokens, p):
    x = p["embed"][tokens]                               # (B, T, D)

    def conv(x, w, b):                                   # same-padding conv1d, channels last
        xm1 = jnp.pad(x, ((0, 0), (1, 0), (0, 0)))[:, :-1]
        xp1 = jnp.pad(x, ((0, 0), (0, 1), (0, 0)))[:, 1:]
        return xm1 @ w[0] + x @ w[1] + xp1 @ w[2] + b

    def pool(x):
        B, T, C = x.shape
        return x.reshape(B, T // 2, 2, C).max(axis=2)

    y = jax.nn.relu(conv(x, p["w1"], p["b1"]))
    y = pool(y)
    y = jax.nn.relu(conv(y, p["w2"], p["b2"]))
    y = pool(y)
    y = jax.nn.relu(conv(y, p["w3"], p["b3"]))
    m = y.max(axis=1)                                    # (B, 128)
    return m @ p["wfc"] + p["bfc"]


if __name__ == "__main__":
    V, D, K = 50, 32, 4       # vocab, embed_dim, n_outputs
    B, T = 2, 16              # batch, sequence length (T divisible by 4 for the two pools)

    key = jax.random.PRNGKey(0)
    pkey, tkey = jax.random.split(key)
    params = init_params(pkey, V, D, K)
    tokens = jax.random.randint(tkey, (B, T), 0, V)

    ref = reference_forward(tokens, params)

    # exact-dtype path: must match the f32 reference tightly
    out_f32 = jax.block_until_ready(cnn_forward(tokens, params, compute_dtype=jnp.float32))
    assert out_f32.shape == (B, K)
    assert jnp.allclose(out_f32, ref, atol=1e-4, rtol=1e-4), (out_f32, ref)

    # bf16-MXU path (default): f32 accumulation, looser tolerance
    out_bf16 = jax.block_until_ready(cnn_forward(tokens, params, compute_dtype=jnp.bfloat16))
    assert out_bf16.shape == (B, K)
    assert jnp.allclose(out_bf16, ref, atol=3e-2, rtol=3e-2), (out_bf16, ref)

    print("KERNEL_OK")
</pallas_src>

<mosaic_0001>
module attributes {stable_mosaic.version = 11 : i64} {
  func.func @cnn_kernel(%arg0: i32, %arg1: memref<16x16xi32, #tpu.memory_space<vmem>>, %arg2: memref<128x32xf32, #tpu.memory_space<vmem>>, %arg3: memref<3x32x32xf32, #tpu.memory_space<vmem>>, %arg4: memref<1x32xf32, #tpu.memory_space<vmem>>, %arg5: memref<3x32x64xf32, #tpu.memory_space<vmem>>, %arg6: memref<1x64xf32, #tpu.memory_space<vmem>>, %arg7: memref<3x64x128xf32, #tpu.memory_space<vmem>>, %arg8: memref<1x128xf32, #tpu.memory_space<vmem>>, %arg9: memref<128x128xf32, #tpu.memory_space<vmem>>, %arg10: memref<1x128xf32, #tpu.memory_space<vmem>>, %arg11: memref<16x128xf32, #tpu.memory_space<vmem>>) attributes {dimension_semantics = [#tpu.dimension_semantics<parallel>], iteration_bounds = array<i64: 1>, scalar_prefetch = 0 : i64, scratch_operands = 0 : i64, tpu.core_type = #tpu.core_type<tc>, window_params = [{transform_indices = @transform_0, window_bounds = array<i64: 16, 16>}, {pipeline_mode = #tpu.pipeline_mode<synchronous>, transform_indices = @transform_1, window_bounds = array<i64: 128, 32>}, {pipeline_mode = #tpu.pipeline_mode<synchronous>, transform_indices = @transform_2, window_bounds = array<i64: 3, 32, 32>}, {pipeline_mode = #tpu.pipeline_mode<synchronous>, transform_indices = @transform_3, window_bounds = array<i64: 1, 32>}, {pipeline_mode = #tpu.pipeline_mode<synchronous>, transform_indices = @transform_4, window_bounds = array<i64: 3, 32, 64>}, {pipeline_mode = #tpu.pipeline_mode<synchronous>, transform_indices = @transform_5, window_bounds = array<i64: 1, 64>}, {pipeline_mode = #tpu.pipeline_mode<synchronous>, transform_indices = @transform_6, window_bounds = array<i64: 3, 64, 128>}, {pipeline_mode = #tpu.pipeline_mode<synchronous>, transform_indices = @transform_7, window_bounds = array<i64: 1, 128>}, {pipeline_mode = #tpu.pipeline_mode<synchronous>, transform_indices = @transform_8, window_bounds = array<i64: 128, 128>}, {pipeline_mode = #tpu.pipeline_mode<synchronous>, transform_indices = @transform_9, window_bounds = array<i64: 1, 128>}, {transform_indices = @transform_10, window_bounds = array<i64: 16, 128>}]} {
    %c0 = arith.constant 0 : index
    %c0_0 = arith.constant 0 : index
    %0 = vector.load %arg1[%c0, %c0_0] : memref<16x16xi32, #tpu.memory_space<vmem>>, vector<16x16xi32>
    %1 = tpu.iota {dimensions = array<i32: 2>} : vector<16x16x128xi32>
    %2 = vector.shape_cast %0 : vector<16x16xi32> to vector<16x16x1xi32>
    %3 = vector.broadcast %2 : vector<16x16x1xi32> to vector<16x16x128xi32>
    %4 = arith.cmpi eq, %3, %1 : vector<16x16x128xi32>
    %cst = arith.constant 1.000000e+00 : f32
    %cst_1 = arith.constant 0.000000e+00 : f32
    %5 = vector.broadcast %cst : f32 to vector<16x16x128xf32>
    %6 = vector.broadcast %cst_1 : f32 to vector<16x16x128xf32>
    %7 = arith.select %4, %5, %6 : vector<16x16x128xi1>, vector<16x16x128xf32>
    %8 = vector.shape_cast %7 : vector<16x16x128xf32> to vector<256x128xf32>
    %c0_2 = arith.constant 0 : index
    %c0_3 = arith.constant 0 : index
    %9 = vector.load %arg2[%c0_2, %c0_3] : memref<128x32xf32, #tpu.memory_space<vmem>>, vector<128x32xf32>
    %cst_4 = arith.constant dense<0.000000e+00> : vector<256x32xf32>
    %10 = tpu.matmul %8, %9, %cst_4 {dimension_numbers = #tpu.dot_dimension_numbers<[1], [0], [0], [1], [0, 0, 1, 1], [], []>} : vector<256x128xf32>, vector<128x32xf32>, vector<256x32xf32> -> vector<256x32xf32>
    %11 = vector.shape_cast %10 : vector<256x32xf32> to vector<16x16x32xf32>
    %cst_5 = arith.constant 0.000000e+00 : f32
    %12 = vector.broadcast %cst_5 : f32 to vector<1x16x32xf32>
    %13 = vector.extract_strided_slice %11 {offsets = [0, 0, 0], sizes = [15, 16, 32], strides = [1, 1, 1]} : vector<16x16x32xf32> to vector<15x16x32xf32>
    %14 = tpu.concatenate %12, %13 in 0 : vector<1x16x32xf32>, vector<15x16x32xf32> -> vector<16x16x32xf32>
    %15 = vector.shape_cast %14 : vector<16x16x32xf32> to vector<256x32xf32>
    %16 = vector.shape_cast %11 : vector<16x16x32xf32> to vector<256x32xf32>
    %17 = vector.extract_strided_slice %11 {offsets = [1, 0, 0], sizes = [15, 16, 32], strides = [1, 1, 1]} : vector<16x16x32xf32> to vector<15x16x32xf32>
    %18 = tpu.concatenate %17, %12 in 0 : vector<15x16x32xf32>, vector<1x16x32xf32> -> vector<16x16x32xf32>
    %19 = vector.shape_cast %18 : vector<16x16x32xf32> to vector<256x32xf32>
    %c0_6 = arith.constant 0 : index
    %c0_7 = arith.constant 0 : index
    %c0_8 = arith.constant 0 : index
    %20 = vector.load %arg3[%c0_6, %c0_7, %c0_8] : memref<3x32x32xf32, #tpu.memory_space<vmem>>, vector<3x32x32xf32>
    %21 = vector.extract_strided_slice %20 {offsets = [0, 0, 0], sizes = [1, 32, 32], strides = [1, 1, 1]} : vector<3x32x32xf32> to vector<1x32x32xf32>
    %22 = vector.shape_cast %21 : vector<1x32x32xf32> to vector<32x32xf32>
    %cst_9 = arith.constant dense<0.000000e+00> : vector<256x32xf32>
    %23 = tpu.matmul %15, %22, %cst_9 {dimension_numbers = #tpu.dot_dimension_numbers<[1], [0], [0], [1], [0, 0, 1, 1], [], []>} : vector<256x32xf32>, vector<32x32xf32>, vector<256x32xf32> -> vector<256x32xf32>
    %24 = vector.extract_strided_slice %20 {offsets = [1, 0, 0], sizes = [1, 32, 32], strides = [1, 1, 1]} : vector<3x32x32xf32> to vector<1x32x32xf32>
    %25 = vector.shape_cast %24 : vector<1x32x32xf32> to vector<32x32xf32>
    %cst_10 = arith.constant dense<0.000000e+00> : vector<256x32xf32>
    %26 = tpu.matmul %16, %25, %cst_10 {dimension_numbers = #tpu.dot_dimension_numbers<[1], [0], [0], [1], [0, 0, 1, 1], [], []>} : vector<256x32xf32>, vector<32x32xf32>, vector<256x32xf32> -> vector<256x32xf32>
    %27 = arith.addf %23, %26 : vector<256x32xf32>
    %28 = vector.extract_strided_slice %20 {offsets = [2, 0, 0], sizes = [1, 32, 32], strides = [1, 1, 1]} : vector<3x32x32xf32> to vector<1x32x32xf32>
    %29 = vector.shape_cast %28 : vector<1x32x32xf32> to vector<32x32xf32>
    %cst_11 = arith.constant dense<0.000000e+00> : vector<256x32xf32>
    %30 = tpu.matmul %19, %29, %cst_11 {dimension_numbers = #tpu.dot_dimension_numbers<[1], [0], [0], [1], [0, 0, 1, 1], [], []>} : vector<256x32xf32>, vector<32x32xf32>, vector<256x32xf32> -> vector<256x32xf32>
    %31 = arith.addf %27, %30 : vector<256x32xf32>
    %c0_12 = arith.constant 0 : index
    %c0_13 = arith.constant 0 : index
    %32 = vector.load %arg4[%c0_12, %c0_13] : memref<1x32xf32, #tpu.memory_space<vmem>>, vector<1x32xf32>
    %33 = vector.broadcast %32 : vector<1x32xf32> to vector<256x32xf32>
    %34 = arith.addf %31, %33 : vector<256x32xf32>
    %cst_14 = arith.constant 0.000000e+00 : f32
    %35 = vector.broadcast %cst_14 : f32 to vector<256x32xf32>
    %36 = arith.maximumf %34, %35 : vector<256x32xf32>
    %37 = vector.shape_cast %36 : vector<256x32xf32> to vector<16x16x32xf32>
    %38 = vector.shape_cast %37 : vector<16x16x32xf32> to vector<8x2x16x32xf32>
    %cst_15 = arith.constant dense<0xFF800000> : vector<8x16x32xf32>
    %39 = vector.multi_reduction <maximumf>, %38, %cst_15 [1] : vector<8x2x16x32xf32> to vector<8x16x32xf32>
    %cst_16 = arith.constant 0.000000e+00 : f32
    %40 = vector.broadcast %cst_16 : f32 to vector<1x16x32xf32>
    %41 = vector.extract_strided_slice %39 {offsets = [0, 0, 0], sizes = [7, 16, 32], strides = [1, 1, 1]} : vector<8x16x32xf32> to vector<7x16x32xf32>
    %42 = tpu.concatenate %40, %41 in 0 : vector<1x16x32xf32>, vector<7x16x32xf32> -> vector<8x16x32xf32>
    %43 = vector.shape_cast %42 : vector<8x16x32xf32> to vector<128x32xf32>
    %44 = vector.shape_cast %39 : vector<8x16x32xf32> to vector<128x32xf32>
    %45 = vector.extract_strided_slice %39 {offsets = [1, 0, 0], sizes = [7, 16, 32], strides = [1, 1, 1]} : vector<8x16x32xf32> to vector<7x16x32xf32>
    %46 = tpu.concatenate %45, %40 in 0 : vector<7x16x32xf32>, vector<1x16x32xf32> -> vector<8x16x32xf32>
    %47 = vector.shape_cast %46 : vector<8x16x32xf32> to vector<128x32xf32>
    %c0_17 = arith.constant 0 : index
    %c0_18 = arith.constant 0 : index
    %c0_19 = arith.constant 0 : index
    %48 = vector.load %arg5[%c0_17, %c0_18, %c0_19] : memref<3x32x64xf32, #tpu.memory_space<vmem>>, vector<3x32x64xf32>
    %49 = vector.extract_strided_slice %48 {offsets = [0, 0, 0], sizes = [1, 32, 64], strides = [1, 1, 1]} : vector<3x32x64xf32> to vector<1x32x64xf32>
    %50 = vector.shape_cast %49 : vector<1x32x64xf32> to vector<32x64xf32>
    %cst_20 = arith.constant dense<0.000000e+00> : vector<128x64xf32>
    %51 = tpu.matmul %43, %50, %cst_20 {dimension_numbers = #tpu.dot_dimension_numbers<[1], [0], [0], [1], [0, 0, 1, 1], [], []>} : vector<128x32xf32>, vector<32x64xf32>, vector<128x64xf32> -> vector<128x64xf32>
    %52 = vector.extract_strided_slice %48 {offsets = [1, 0, 0], sizes = [1, 32, 64], strides = [1, 1, 1]} : vector<3x32x64xf32> to vector<1x32x64xf32>
    %53 = vector.shape_cast %52 : vector<1x32x64xf32> to vector<32x64xf32>
    %cst_21 = arith.constant dense<0.000000e+00> : vector<128x64xf32>
    %54 = tpu.matmul %44, %53, %cst_21 {dimension_numbers = #tpu.dot_dimension_numbers<[1], [0], [0], [1], [0, 0, 1, 1], [], []>} : vector<128x32xf32>, vector<32x64xf32>, vector<128x64xf32> -> vector<128x64xf32>
    %55 = arith.addf %51, %54 : vector<128x64xf32>
    %56 = vector.extract_strided_slice %48 {offsets = [2, 0, 0], sizes = [1, 32, 64], strides = [1, 1, 1]} : vector<3x32x64xf32> to vector<1x32x64xf32>
    %57 = vector.shape_cast %56 : vector<1x32x64xf32> to vector<32x64xf32>
    %cst_22 = arith.constant dense<0.000000e+00> : vector<128x64xf32>
    %58 = tpu.matmul %47, %57, %cst_22 {dimension_numbers = #tpu.dot_dimension_numbers<[1], [0], [0], [1], [0, 0, 1, 1], [], []>} : vector<128x32xf32>, vector<32x64xf32>, vector<128x64xf32> -> vector<128x64xf32>
    %59 = arith.addf %55, %58 : vector<128x64xf32>
    %c0_23 = arith.constant 0 : index
    %c0_24 = arith.constant 0 : index
    %60 = vector.load %arg6[%c0_23, %c0_24] : memref<1x64xf32, #tpu.memory_space<vmem>>, vector<1x64xf32>
    %61 = vector.broadcast %60 : vector<1x64xf32> to vector<128x64xf32>
    %62 = arith.addf %59, %61 : vector<128x64xf32>
    %cst_25 = arith.constant 0.000000e+00 : f32
    %63 = vector.broadcast %cst_25 : f32 to vector<128x64xf32>
    %64 = arith.maximumf %62, %63 : vector<128x64xf32>
    %65 = vector.shape_cast %64 : vector<128x64xf32> to vector<8x16x64xf32>
    %66 = vector.shape_cast %65 : vector<8x16x64xf32> to vector<4x2x16x64xf32>
    %cst_26 = arith.constant dense<0xFF800000> : vector<4x16x64xf32>
    %67 = vector.multi_reduction <maximumf>, %66, %cst_26 [1] : vector<4x2x16x64xf32> to vector<4x16x64xf32>
    %cst_27 = arith.constant 0.000000e+00 : f32
    %68 = vector.broadcast %cst_27 : f32 to vector<1x16x64xf32>
    %69 = vector.extract_strided_slice %67 {offsets = [0, 0, 0], sizes = [3, 16, 64], strides = [1, 1, 1]} : vector<4x16x64xf32> to vector<3x16x64xf32>
    %70 = tpu.concatenate %68, %69 in 0 : vector<1x16x64xf32>, vector<3x16x64xf32> -> vector<4x16x64xf32>
    %71 = vector.shape_cast %70 : vector<4x16x64xf32> to vector<64x64xf32>
    %72 = vector.shape_cast %67 : vector<4x16x64xf32> to vector<64x64xf32>
    %73 = vector.extract_strided_slice %67 {offsets = [1, 0, 0], sizes = [3, 16, 64], strides = [1, 1, 1]} : vector<4x16x64xf32> to vector<3x16x64xf32>
    %74 = tpu.concatenate %73, %68 in 0 : vector<3x16x64xf32>, vector<1x16x64xf32> -> vector<4x16x64xf32>
    %75 = vector.shape_cast %74 : vector<4x16x64xf32> to vector<64x64xf32>
    %c0_28 = arith.constant 0 : index
    %c0_29 = arith.constant 0 : index
    %c0_30 = arith.constant 0 : index
    %76 = vector.load %arg7[%c0_28, %c0_29, %c0_30] : memref<3x64x128xf32, #tpu.memory_space<vmem>>, vector<3x64x128xf32>
    %77 = vector.extract_strided_slice %76 {offsets = [0, 0, 0], sizes = [1, 64, 128], strides = [1, 1, 1]} : vector<3x64x128xf32> to vector<1x64x128xf32>
    %78 = vector.shape_cast %77 : vector<1x64x128xf32> to vector<64x128xf32>
    %cst_31 = arith.constant dense<0.000000e+00> : vector<64x128xf32>
    %79 = tpu.matmul %71, %78, %cst_31 {dimension_numbers = #tpu.dot_dimension_numbers<[1], [0], [0], [1], [0, 0, 1, 1], [], []>} : vector<64x64xf32>, vector<64x128xf32>, vector<64x128xf32> -> vector<64x128xf32>
    %80 = vector.extract_strided_slice %76 {offsets = [1, 0, 0], sizes = [1, 64, 128], strides = [1, 1, 1]} : vector<3x64x128xf32> to vector<1x64x128xf32>
    %81 = vector.shape_cast %80 : vector<1x64x128xf32> to vector<64x128xf32>
    %cst_32 = arith.constant dense<0.000000e+00> : vector<64x128xf32>
    %82 = tpu.matmul %72, %81, %cst_32 {dimension_numbers = #tpu.dot_dimension_numbers<[1], [0], [0], [1], [0, 0, 1, 1], [], []>} : vector<64x64xf32>, vector<64x128xf32>, vector<64x128xf32> -> vector<64x128xf32>
    %83 = arith.addf %79, %82 : vector<64x128xf32>
    %84 = vector.extract_strided_slice %76 {offsets = [2, 0, 0], sizes = [1, 64, 128], strides = [1, 1, 1]} : vector<3x64x128xf32> to vector<1x64x128xf32>
    %85 = vector.shape_cast %84 : vector<1x64x128xf32> to vector<64x128xf32>
    %cst_33 = arith.constant dense<0.000000e+00> : vector<64x128xf32>
    %86 = tpu.matmul %75, %85, %cst_33 {dimension_numbers = #tpu.dot_dimension_numbers<[1], [0], [0], [1], [0, 0, 1, 1], [], []>} : vector<64x64xf32>, vector<64x128xf32>, vector<64x128xf32> -> vector<64x128xf32>
    %87 = arith.addf %83, %86 : vector<64x128xf32>
    %c0_34 = arith.constant 0 : index
    %c0_35 = arith.constant 0 : index
    %88 = vector.load %arg8[%c0_34, %c0_35] : memref<1x128xf32, #tpu.memory_space<vmem>>, vector<1x128xf32>
    %89 = vector.broadcast %88 : vector<1x128xf32> to vector<64x128xf32>
    %90 = arith.addf %87, %89 : vector<64x128xf32>
    %cst_36 = arith.constant 0.000000e+00 : f32
    %91 = vector.broadcast %cst_36 : f32 to vector<64x128xf32>
    %92 = arith.maximumf %90, %91 : vector<64x128xf32>
    %93 = vector.shape_cast %92 : vector<64x128xf32> to vector<4x16x128xf32>
    %cst_37 = arith.constant dense<0xFF800000> : vector<16x128xf32>
    %94 = vector.multi_reduction <maximumf>, %93, %cst_37 [0] : vector<4x16x128xf32> to vector<16x128xf32>
    %c0_38 = arith.constant 0 : index
    %c0_39 = arith.constant 0 : index
    %95 = vector.load %arg9[%c0_38, %c0_39] : memref<128x128xf32, #tpu.memory_space<vmem>>, vector<128x128xf32>
    %cst_40 = arith.constant dense<0.000000e+00> : vector<16x128xf32>
    %96 = tpu.matmul %94, %95, %cst_40 {dimension_numbers = #tpu.dot_dimension_numbers<[1], [0], [0], [1], [0, 0, 1, 1], [], []>} : vector<16x128xf32>, vector<128x128xf32>, vector<16x128xf32> -> vector<16x128xf32>
    %c0_41 = arith.constant 0 : index
    %c0_42 = arith.constant 0 : index
    %97 = vector.load %arg10[%c0_41, %c0_42] : memref<1x128xf32, #tpu.memory_space<vmem>>, vector<1x128xf32>
    %98 = vector.broadcast %97 : vector<1x128xf32> to vector<16x128xf32>
    %99 = arith.addf %96, %98 : vector<16x128xf32>
    %c0_43 = arith.constant 0 : index
    %c0_44 = arith.constant 0 : index
    %100 = vector.load %arg11[%c0_43, %c0_44] : memref<16x128xf32, #tpu.memory_space<vmem>>, vector<16x128xf32>
    tpu.vector_store %arg11[%c0_43, %c0_44], %99 {strides = array<i32>} : memref<16x128xf32, #tpu.memory_space<vmem>>, vector<16x128xf32>,
    return
  }
  func.func @transform_0(%arg0: i32) -> (i32, i32) {
    %c0_i32 = arith.constant 0 : i32
    %c0_i32_0 = arith.constant 0 : i32
    return %c0_i32, %arg0 : i32, i32
  }
  func.func @transform_1(%arg0: i32) -> (i32, i32) {
    %c0_i32 = arith.constant 0 : i32
    %c0_i32_0 = arith.constant 0 : i32
    %c0_i32_1 = arith.constant 0 : i32
    return %c0_i32, %c0_i32_0 : i32, i32
  }
  func.func @transform_2(%arg0: i32) -> (i32, i32, i32) {
    %c0_i32 = arith.constant 0 : i32
    %c0_i32_0 = arith.constant 0 : i32
    %c0_i32_1 = arith.constant 0 : i32
    %c0_i32_2 = arith.constant 0 : i32
    return %c0_i32, %c0_i32_0, %c0_i32_1 : i32, i32, i32
  }
  func.func @transform_3(%arg0: i32) -> (i32, i32) {
    %c0_i32 = arith.constant 0 : i32
    %c0_i32_0 = arith.constant 0 : i32
    %c0_i32_1 = arith.constant 0 : i32
    return %c0_i32, %c0_i32_0 : i32, i32
  }
  func.func @transform_4(%arg0: i32) -> (i32, i32, i32) {
    %c0_i32 = arith.constant 0 : i32
    %c0_i32_0 = arith.constant 0 : i32
    %c0_i32_1 = arith.constant 0 : i32
    %c0_i32_2 = arith.constant 0 : i32
    return %c0_i32, %c0_i32_0, %c0_i32_1 : i32, i32, i32
  }
  func.func @transform_5(%arg0: i32) -> (i32, i32) {
    %c0_i32 = arith.constant 0 : i32
    %c0_i32_0 = arith.constant 0 : i32
    %c0_i32_1 = arith.constant 0 : i32
    return %c0_i32, %c0_i32_0 : i32, i32
  }
  func.func @transform_6(%arg0: i32) -> (i32, i32, i32) {
    %c0_i32 = arith.constant 0 : i32
    %c0_i32_0 = arith.constant 0 : i32
    %c0_i32_1 = arith.constant 0 : i32
    %c0_i32_2 = arith.constant 0 : i32
    return %c0_i32, %c0_i32_0, %c0_i32_1 : i32, i32, i32
  }
  func.func @transform_7(%arg0: i32) -> (i32, i32) {
    %c0_i32 = arith.constant 0 : i32
    %c0_i32_0 = arith.constant 0 : i32
    %c0_i32_1 = arith.constant 0 : i32
    return %c0_i32, %c0_i32_0 : i32, i32
  }
  func.func @transform_8(%arg0: i32) -> (i32, i32) {
    %c0_i32 = arith.constant 0 : i32
    %c0_i32_0 = arith.constant 0 : i32
    %c0_i32_1 = arith.constant 0 : i32
    return %c0_i32, %c0_i32_0 : i32, i32
  }
  func.func @transform_9(%arg0: i32) -> (i32, i32) {
    %c0_i32 = arith.constant 0 : i32
    %c0_i32_0 = arith.constant 0 : i32
    %c0_i32_1 = arith.constant 0 : i32
    return %c0_i32, %c0_i32_0 : i32, i32
  }
  func.func @transform_10(%arg0: i32) -> (i32, i32) {
    %c0_i32 = arith.constant 0 : i32
    %c0_i32_0 = arith.constant 0 : i32
    return %arg0, %c0_i32 : i32, i32
  }
}

</mosaic_0001>

<llo_original>
// kernel: tpu_custom_call.1
$region0: #{tpu_custom_call.1}
  #allocation0 [shape = 'u32[]', space=smem, size = 0x4, offset = 0x4, fixed_abs, tag = 'smem constant byte address 0x4 - core index']
  #allocation1 [shape = 'u32[72,128]{1,0:T(1,128)}', space=vmem, size = 0x9000, scoped, tag = 'internal scratch']
  %s0 = inlined_call_operand.vmem [shape: s32[16,16], index: 0, kind: input, shape index: {}]
  %s1 = inlined_call_operand.vmem [shape: f32[128,32], index: 1, kind: input, shape index: {}]
  %s2 = inlined_call_operand.hbm [shape: f32[3,32,32], index: 2, kind: input, shape index: {}]
  %s3 = inlined_call_operand.vmem [shape: f32[1,32], index: 3, kind: input, shape index: {}]
  %s4 = inlined_call_operand.hbm [shape: f32[3,32,64], index: 4, kind: input, shape index: {}]
  %s5 = inlined_call_operand.vmem [shape: f32[1,64], index: 5, kind: input, shape index: {}]
  %s6 = inlined_call_operand.hbm [shape: f32[3,64,128], index: 6, kind: input, shape index: {}]
  %s7 = inlined_call_operand.vmem [shape: f32[1,128], index: 7, kind: input, shape index: {}]
  %s8 = inlined_call_operand.vmem [shape: f32[128,128], index: 8, kind: input, shape index: {}]
  %s9 = inlined_call_operand.vmem [shape: f32[1,128], index: 9, kind: input, shape index: {}]
  %s10 = inlined_call_operand.hbm [shape: f32[16,128], index: 10, kind: output, shape index: {}]
  %s11 = sld [smem:[#allocation0]]
  $region62: #{tpu_custom_call.1} parent=0
    _
  %s13 = ssub.s32 1, %s11
  %s14 = scalar_select 0, %s13, %s11
  $region1: #{tpu_custom_call.1} parent=0
    #allocation2 [shape = 'u8[49152]{0}', space=vmem, size = 0xc000, scoped, tag = 'input window, operand 2, single buffered']
    #allocation3 [shape = 's32[1]{0}', space=sflag, size = 0x4, scoped, tag = 'scoped memory for tpu_custom_call.1']
    #allocation4 [shape = 's32[1]{0}', space=sflag, size = 0x4, scoped, tag = 'scoped memory for tpu_custom_call.1']
    #allocation5 [shape = 'u8[49152]{0}', space=vmem, size = 0xc000, scoped, tag = 'input window, operand 4, single buffered']
    #allocation6 [shape = 's32[1]{0}', space=sflag, size = 0x4, scoped, tag = 'scoped memory for tpu_custom_call.1']
    #allocation7 [shape = 'u8[98304]{0}', space=vmem, size = 0x18000, scoped, tag = 'input window, operand 6, single buffered']
    #allocation8 [shape = 'u8[8192]{0}', space=vmem, size = 0x2000, scoped, tag = 'output window, operand 0, single buffered']
    %15 = vsyncpa [#allocation3], 0
    %16 = vsyncpa [#allocation6], 0
    %17 = vsyncpa [#allocation4], 0
    // Predicated region
    $region2: #{tpu_custom_call.1} parent=1 // pred_check
      _
    $region3: #{tpu_custom_call.1} parent=1 // pred_check_branch
      %19 = sbr.rel (0) target = $region5
    $region4: #{tpu_custom_call.1} parent=1 // pred_region
      _
    $region5: #{tpu_custom_call.1} parent=1 // pred_fallthru
      _
    // Predicated region
    $region6: #{tpu_custom_call.1} parent=1 // pred_check
      _
    $region7: #{tpu_custom_call.1} parent=1 // pred_check_branch
      %21 = sbr.rel (0) target = $region9
    $region8: #{tpu_custom_call.1} parent=1 // pred_region
      _
    $region9: #{tpu_custom_call.1} parent=1 // pred_fallthru
      _
    // Predicated region
    $region10: #{tpu_custom_call.1} parent=1 // pred_check
      _
    $region11: #{tpu_custom_call.1} parent=1 // pred_check_branch
      %23 = sbr.rel (0) target = $region13
    $region12: #{tpu_custom_call.1} parent=1 // pred_region
      %25 = vsyncadd [#allocation3], 0
      %s26 = sshll.u32 %s2, 4
      %s27 = int_to_ptr.hbm [resolvable:$true] %s26
      %s28 = sshll.u32 [#allocation2], 4
      %s29 = int_to_ptr.vmem [resolvable:$true] %s28
      %34 = dma.hbm_to_vmem [thread:$0]  %s27, 1536, %s29, [#allocation3], 128, 128, 8
    $region13: #{tpu_custom_call.1} parent=1 // pred_fallthru
      _
    // Predicated region
    $region14: #{tpu_custom_call.1} parent=1 // pred_check
      _
    $region15: #{tpu_custom_call.1} parent=1 // pred_check_branch
      %36 = sbr.rel (0) target = $region17
    $region16: #{tpu_custom_call.1} parent=1 // pred_region
      _
    $region17: #{tpu_custom_call.1} parent=1 // pred_fallthru
      _
    // Predicated region
    $region18: #{tpu_custom_call.1} parent=1 // pred_check
      _
    $region19: #{tpu_custom_call.1} parent=1 // pred_check_branch
      %38 = sbr.rel (0) target = $region21
    $region20: #{tpu_custom_call.1} parent=1 // pred_region
      %40 = vsyncadd [#allocation6], 0
      %s41 = sshll.u32 %s4, 4
      %s42 = int_to_ptr.hbm [resolvable:$true] %s41
      %s43 = sshll.u32 [#allocation5], 4
      %s44 = int_to_ptr.vmem [resolvable:$true] %s43
      %49 = dma.hbm_to_vmem [thread:$0]  %s42, 1536, %s44, [#allocation6], 128, 128, 8
    $region21: #{tpu_custom_call.1} parent=1 // pred_fallthru
      _
    // Predicated region
    $region22: #{tpu_custom_call.1} parent=1 // pred_check
      _
    $region23: #{tpu_custom_call.1} parent=1 // pred_check_branch
      %51 = sbr.rel (0) target = $region25
    $region24: #{tpu_custom_call.1} parent=1 // pred_region
      _
    $region25: #{tpu_custom_call.1} parent=1 // pred_fallthru
      _
    // Predicated region
    $region26: #{tpu_custom_call.1} parent=1 // pred_check
      _
    $region27: #{tpu_custom_call.1} parent=1 // pred_check_branch
      %53 = sbr.rel (0) target = $region29
    $region28: #{tpu_custom_call.1} parent=1 // pred_region
      %55 = vsyncadd [#allocation6], 0
      %s56 = sshll.u32 %s6, 4
      %s57 = int_to_ptr.hbm [resolvable:$true] %s56
      %s58 = sshll.u32 [#allocation7], 4
      %s59 = int_to_ptr.vmem [resolvable:$true] %s58
      %64 = dma.hbm_to_vmem [thread:$0]  %s57, 3072, %s59, [#allocation6], 128, 128, 8
    $region29: #{tpu_custom_call.1} parent=1 // pred_fallthru
      _
    // Predicated region
    $region30: #{tpu_custom_call.1} parent=1 // pred_check
      _
    $region31: #{tpu_custom_call.1} parent=1 // pred_check_branch
      %66 = sbr.rel (0) target = $region33
    $region32: #{tpu_custom_call.1} parent=1 // pred_region
      _
    $region33: #{tpu_custom_call.1} parent=1 // pred_fallthru
      _
    // Predicated region
    $region34: #{tpu_custom_call.1} parent=1 // pred_check
      _
    $region35: #{tpu_custom_call.1} parent=1 // pred_check_branch
      %68 = sbr.rel (0) target = $region37
    $region36: #{tpu_custom_call.1} parent=1 // pred_region
      _
    $region37: #{tpu_custom_call.1} parent=1 // pred_fallthru
      _
    // Predicated region
    $region38: #{tpu_custom_call.1} parent=1 // pred_check
      _
    $region39: #{tpu_custom_call.1} parent=1 // pred_check_branch
      %70 = sbr.rel (0) target = $region41
    $region40: #{tpu_custom_call.1} parent=1 // pred_region
      _
    $region41: #{tpu_custom_call.1} parent=1 // pred_fallthru
      _
    // Predicated region
    $region42: #{tpu_custom_call.1} parent=1 // pred_check
      _
    $region43: #{tpu_custom_call.1} parent=1 // pred_check_branch
      %72 = sbr.rel (0) target = $region45
    $region44: #{tpu_custom_call.1} parent=1 // pred_region
      %74 = dma.done [#allocation3], 1536
    $region45: #{tpu_custom_call.1} parent=1 // pred_fallthru
      _
    // Predicated region
    $region46: #{tpu_custom_call.1} parent=1 // pred_check
      _
    $region47: #{tpu_custom_call.1} parent=1 // pred_check_branch
      %76 = sbr.rel (0) target = $region49
    $region48: #{tpu_custom_call.1} parent=1 // pred_region
      %78 = dma.done [#allocation6], 1536
    $region49: #{tpu_custom_call.1} parent=1 // pred_fallthru
      _
    // Predicated region
    $region50: #{tpu_custom_call.1} parent=1 // pred_check
      _
    $region51: #{tpu_custom_call.1} parent=1 // pred_check_branch
      %80 = sbr.rel (0) target = $region53
    $region52: #{tpu_custom_call.1} parent=1 // pred_region
      %82 = dma.done [#allocation6], 3072
    $region53: #{tpu_custom_call.1} parent=1 // pred_fallthru
      _
    %v83 = vld [vmem:[%s0] sm:$0xff]
    %v84 = vld [vmem:[%s0 + $0x8] sm:$0xff]
    %v85 = vlaneseq
    %v86 = vand.u32 %v85, 127
    %v87 = vperm.slane %v83, 0
    %v88 = vlaneseq
    %v89 = vshrl.u32 %v88, 7
    %91 = vset.pattern.permute.xlu0 %v89
    %92 = vperm.xlu0 %91, %v87
    %v93 = vpop.permute.xlu0 %92
    %v94 = vlaneseq
    %v95 = vshrl.u32 %v94, 7
    %v96 = vadd.s32 %v95, 8
    %97 = vset.pattern.permute.xlu0 %v96
    %98 = vperm.xlu0 %97, %v87
    %v99 = vpop.permute.xlu0 %98
    %v100 = vperm.slane %v83, 1
    %v101 = vlaneseq
    %v102 = vshrl.u32 %v101, 7
    %104 = vset.pattern.permute.xlu0 %v102
    %105 = vperm.xlu0 %104, %v100
    %v106 = vpop.permute.xlu0 %105
    %v107 = vlaneseq
    %v108 = vshrl.u32 %v107, 7
    %v109 = vadd.s32 %v108, 8
    %110 = vset.pattern.permute.xlu0 %v109
    %111 = vperm.xlu0 %110, %v100
    %v112 = vpop.permute.xlu0 %111
    %v113 = vperm.slane %v83, 2
    %v114 = vlaneseq
    %v115 = vshrl.u32 %v114, 7
    %117 = vset.pattern.permute.xlu0 %v115
    %118 = vperm.xlu0 %117, %v113
    %v119 = vpop.permute.xlu0 %118
    %v120 = vlaneseq
    %v121 = vshrl.u32 %v120, 7
    %v122 = vadd.s32 %v121, 8
    %123 = vset.pattern.permute.xlu0 %v122
    %124 = vperm.xlu0 %123, %v113
    %v125 = vpop.permute.xlu0 %124
    %v126 = vperm.slane %v83, 3
    %v127 = vlaneseq
    %v128 = vshrl.u32 %v127, 7
    %130 = vset.pattern.permute.xlu0 %v128
    %131 = vperm.xlu0 %130, %v126
    %v132 = vpop.permute.xlu0 %131
    %v133 = vlaneseq
    %v134 = vshrl.u32 %v133, 7
    %v135 = vadd.s32 %v134, 8
    %136 = vset.pattern.permute.xlu0 %v135
    %137 = vperm.xlu0 %136, %v126
    %v138 = vpop.permute.xlu0 %137
    %v139 = vperm.slane %v83, 4
    %v140 = vlaneseq
    %v141 = vshrl.u32 %v140, 7
    %143 = vset.pattern.permute.xlu0 %v141
    %144 = vperm.xlu0 %143, %v139
    %v145 = vpop.permute.xlu0 %144
    %v146 = vlaneseq
    %v147 = vshrl.u32 %v146, 7
    %v148 = vadd.s32 %v147, 8
    %149 = vset.pattern.permute.xlu0 %v148
    %150 = vperm.xlu0 %149, %v139
    %v151 = vpop.permute.xlu0 %150
    %v152 = vperm.slane %v83, 5
    %v153 = vlaneseq
    %v154 = vshrl.u32 %v153, 7
    %156 = vset.pattern.permute.xlu0 %v154
    %157 = vperm.xlu0 %156, %v152
    %v158 = vpop.permute.xlu0 %157
    %v159 = vlaneseq
    %v160 = vshrl.u32 %v159, 7
    %v161 = vadd.s32 %v160, 8
    %162 = vset.pattern.permute.xlu0 %v161
    %163 = vperm.xlu0 %162, %v152
    %v164 = vpop.permute.xlu0 %163
    %v165 = vperm.slane %v83, 6
    %v166 = vlaneseq
    %v167 = vshrl.u32 %v166, 7
    %169 = vset.pattern.permute.xlu0 %v167
    %170 = vperm.xlu0 %169, %v165
    %v171 = vpop.permute.xlu0 %170
    %v172 = vlaneseq
    %v173 = vshrl.u32 %v172, 7
    %v174 = vadd.s32 %v173, 8
    %175 = vset.pattern.permute.xlu0 %v174
    %176 = vperm.xlu0 %175, %v165
    %v177 = vpop.permute.xlu0 %176
    %v178 = vperm.slane %v83, 7
    %v179 = vlaneseq
    %v180 = vshrl.u32 %v179, 7
    %182 = vset.pattern.permute.xlu0 %v180
    %183 = vperm.xlu0 %182, %v178
    %v184 = vpop.permute.xlu0 %183
    %v185 = vlaneseq
    %v186 = vshrl.u32 %v185, 7
    %v187 = vadd.s32 %v186, 8
    %188 = vset.pattern.permute.xlu0 %v187
    %189 = vperm.xlu0 %188, %v178
    %v190 = vpop.permute.xlu0 %189
    %v191 = vperm.slane %v84, 0
    %v192 = vlaneseq
    %v193 = vshrl.u32 %v192, 7
    %195 = vset.pattern.permute.xlu0 %v193
    %196 = vperm.xlu0 %195, %v191
    %v197 = vpop.permute.xlu0 %196
    %v198 = vlaneseq
    %v199 = vshrl.u32 %v198, 7
    %v200 = vadd.s32 %v199, 8
    %201 = vset.pattern.permute.xlu0 %v200
    %202 = vperm.xlu0 %201, %v191
    %v203 = vpop.permute.xlu0 %202
    %v204 = vperm.slane %v84, 1
    %v205 = vlaneseq
    %v206 = vshrl.u32 %v205, 7
    %208 = vset.pattern.permute.xlu0 %v206
    %209 = vperm.xlu0 %208, %v204
    %v210 = vpop.permute.xlu0 %209
    %v211 = vlaneseq
    %v212 = vshrl.u32 %v211, 7
    %v213 = vadd.s32 %v212, 8
    %214 = vset.pattern.permute.xlu0 %v213
    %215 = vperm.xlu0 %214, %v204
    %v216 = vpop.permute.xlu0 %215
    %v217 = vperm.slane %v84, 2
    %v218 = vlaneseq
    %v219 = vshrl.u32 %v218, 7
    %221 = vset.pattern.permute.xlu0 %v219
    %222 = vperm.xlu0 %221, %v217
    %v223 = vpop.permute.xlu0 %222
    %v224 = vlaneseq
    %v225 = vshrl.u32 %v224, 7
    %v226 = vadd.s32 %v225, 8
    %227 = vset.pattern.permute.xlu0 %v226
    %228 = vperm.xlu0 %227, %v217
    %v229 = vpop.permute.xlu0 %228
    %v230 = vperm.slane %v84, 3
    %v231 = vlaneseq
    %v232 = vshrl.u32 %v231, 7
    %234 = vset.pattern.permute.xlu0 %v232
    %235 = vperm.xlu0 %234, %v230
    %v236 = vpop.permute.xlu0 %235
    %v237 = vlaneseq
    %v238 = vshrl.u32 %v237, 7
    %v239 = vadd.s32 %v238, 8
    %240 = vset.pattern.permute.xlu0 %v239
    %241 = vperm.xlu0 %240, %v230
    %v242 = vpop.permute.xlu0 %241
    %v243 = vperm.slane %v84, 4
    %v244 = vlaneseq
    %v245 = vshrl.u32 %v244, 7
    %247 = vset.pattern.permute.xlu0 %v245
    %248 = vperm.xlu0 %247, %v243
    %v249 = vpop.permute.xlu0 %248
    %v250 = vlaneseq
    %v251 = vshrl.u32 %v250, 7
    %v252 = vadd.s32 %v251, 8
    %253 = vset.pattern.permute.xlu0 %v252
    %254 = vperm.xlu0 %253, %v243
    %v255 = vpop.permute.xlu0 %254
    %v256 = vperm.slane %v84, 5
    %v257 = vlaneseq
    %v258 = vshrl.u32 %v257, 7
    %260 = vset.pattern.permute.xlu0 %v258
    %261 = vperm.xlu0 %260, %v256
    %v262 = vpop.permute.xlu0 %261
    %v263 = vlaneseq
    %v264 = vshrl.u32 %v263, 7
    %v265 = vadd.s32 %v264, 8
    %266 = vset.pattern.permute.xlu0 %v265
    %267 = vperm.xlu0 %266, %v256
    %v268 = vpop.permute.xlu0 %267
    %v269 = vperm.slane %v84, 6
    %v270 = vlaneseq
    %v271 = vshrl.u32 %v270, 7
    %273 = vset.pattern.permute.xlu0 %v271
    %274 = vperm.xlu0 %273, %v269
    %v275 = vpop.permute.xlu0 %274
    %v276 = vlaneseq
    %v277 = vshrl.u32 %v276, 7
    %v278 = vadd.s32 %v277, 8
    %279 = vset.pattern.permute.xlu0 %v278
    %280 = vperm.xlu0 %279, %v269
    %v281 = vpop.permute.xlu0 %280
    %v282 = vperm.slane %v84, 7
    %v283 = vlaneseq
    %v284 = vshrl.u32 %v283, 7
    %286 = vset.pattern.permute.xlu0 %v284
    %287 = vperm.xlu0 %286, %v282
    %v288 = vpop.permute.xlu0 %287
    %v289 = vlaneseq
    %v290 = vshrl.u32 %v289, 7
    %v291 = vadd.s32 %v290, 8
    %292 = vset.pattern.permute.xlu0 %v291
    %293 = vperm.xlu0 %292, %v282
    %v294 = vpop.permute.xlu0 %293
    %vm295 = vcmp.eq.s32.totalorder %v93, %v86
    %vm296 = vcmp.eq.s32.totalorder %v99, %v86
    %vm297 = vcmp.eq.s32.totalorder %v106, %v86
    %vm298 = vcmp.eq.s32.totalorder %v112, %v86
    %vm299 = vcmp.eq.s32.totalorder %v119, %v86
    %vm300 = vcmp.eq.s32.totalorder %v125, %v86
    %vm301 = vcmp.eq.s32.totalorder %v132, %v86
    %vm302 = vcmp.eq.s32.totalorder %v138, %v86
    %vm303 = vcmp.eq.s32.totalorder %v145, %v86
    %vm304 = vcmp.eq.s32.totalorder %v151, %v86
    %vm305 = vcmp.eq.s32.totalorder %v158, %v86
    %vm306 = vcmp.eq.s32.totalorder %v164, %v86
    %vm307 = vcmp.eq.s32.totalorder %v171, %v86
    %vm308 = vcmp.eq.s32.totalorder %v177, %v86
    %vm309 = vcmp.eq.s32.totalorder %v184, %v86
    %vm310 = vcmp.eq.s32.totalorder %v190, %v86
    %vm311 = vcmp.eq.s32.totalorder %v197, %v86
    %vm312 = vcmp.eq.s32.totalorder %v203, %v86
    %vm313 = vcmp.eq.s32.totalorder %v210, %v86
    %vm314 = vcmp.eq.s32.totalorder %v216, %v86
    %vm315 = vcmp.eq.s32.totalorder %v223, %v86
    %vm316 = vcmp.eq.s32.totalorder %v229, %v86
    %vm317 = vcmp.eq.s32.totalorder %v236, %v86
    %vm318 = vcmp.eq.s32.totalorder %v242, %v86
    %vm319 = vcmp.eq.s32.totalorder %v249, %v86
    %vm320 = vcmp.eq.s32.totalorder %v255, %v86
    %vm321 = vcmp.eq.s32.totalorder %v262, %v86
    %vm322 = vcmp.eq.s32.totalorder %v268, %v86
    %vm323 = vcmp.eq.s32.totalorder %v275, %v86
    %vm324 = vcmp.eq.s32.totalorder %v281, %v86
    %vm325 = vcmp.eq.s32.totalorder %v288, %v86
    %vm326 = vcmp.eq.s32.totalorder %v294, %v86
    %v327 = vsel %vm295, 1.0, 0.0
    %v328 = vsel %vm296, 1.0, 0.0
    %v329 = vsel %vm297, 1.0, 0.0
    %v330 = vsel %vm298, 1.0, 0.0
    %v331 = vsel %vm299, 1.0, 0.0
    %v332 = vsel %vm300, 1.0, 0.0
    %v333 = vsel %vm301, 1.0, 0.0
    %v334 = vsel %vm302, 1.0, 0.0
    %v335 = vsel %vm303, 1.0, 0.0
    %v336 = vsel %vm304, 1.0, 0.0
    %v337 = vsel %vm305, 1.0, 0.0
    %v338 = vsel %vm306, 1.0, 0.0
    %v339 = vsel %vm307, 1.0, 0.0
    %v340 = vsel %vm308, 1.0, 0.0
    %v341 = vsel %vm309, 1.0, 0.0
    %v342 = vsel %vm310, 1.0, 0.0
    %v343 = vsel %vm311, 1.0, 0.0
    %v344 = vsel %vm312, 1.0, 0.0
    %v345 = vsel %vm313, 1.0, 0.0
    %v346 = vsel %vm314, 1.0, 0.0
    %v347 = vsel %vm315, 1.0, 0.0
    %v348 = vsel %vm316, 1.0, 0.0
    %v349 = vsel %vm317, 1.0, 0.0
    %v350 = vsel %vm318, 1.0, 0.0
    %v351 = vsel %vm319, 1.0, 0.0
    %v352 = vsel %vm320, 1.0, 0.0
    %v353 = vsel %vm321, 1.0, 0.0
    %v354 = vsel %vm322, 1.0, 0.0
    %v355 = vsel %vm323, 1.0, 0.0
    %v356 = vsel %vm324, 1.0, 0.0
    %v357 = vsel %vm325, 1.0, 0.0
    %v358 = vsel %vm326, 1.0, 0.0
    %v359 = vld [vmem:[%s1] sm:$0xff]
    %v360 = vld [vmem:[%s1 + $0x8] sm:$0xff]
    %v361 = vld [vmem:[%s1 + $0x10] sm:$0xff]
    %v362 = vld [vmem:[%s1 + $0x18] sm:$0xff]
    %v363 = vld [vmem:[%s1 + $0x20] sm:$0xff]
    %v364 = vld [vmem:[%s1 + $0x28] sm:$0xff]
    %v365 = vld [vmem:[%s1 + $0x30] sm:$0xff]
    %v366 = vld [vmem:[%s1 + $0x38] sm:$0xff]
    %v367 = vld [vmem:[%s1 + $0x40] sm:$0xff]
    %v368 = vld [vmem:[%s1 + $0x48] sm:$0xff]
    %v369 = vld [vmem:[%s1 + $0x50] sm:$0xff]
    %v370 = vld [vmem:[%s1 + $0x58] sm:$0xff]
    %v371 = vld [vmem:[%s1 + $0x60] sm:$0xff]
    %v372 = vld [vmem:[%s1 + $0x68] sm:$0xff]
    %v373 = vld [vmem:[%s1 + $0x70] sm:$0xff]
    %v374 = vld [vmem:[%s1 + $0x78] sm:$0xff]
    %375 = vmatpush.msra.mxu0 %v374
    %376 = vmatpush.msra.mxu0 %v373
    %377 = vmatpush.msra.mxu0 %v372
    %378 = vmatpush.msra.mxu0 %v371
    %379 = vmatpush.msra.mxu0 %v370
    %380 = vmatpush.msra.mxu0 %v369
    %381 = vmatpush.msra.mxu0 %v368
    %382 = vmatpush.msra.mxu0 %v367
    %383 = vmatpush.msra.mxu0 %v366
    %384 = vmatpush.msra.mxu0 %v365
    %385 = vmatpush.msra.mxu0 %v364
    %386 = vmatpush.msra.mxu0 %v363
    %387 = vmatpush.msra.mxu0 %v362
    %388 = vmatpush.msra.mxu0 %v361
    %389 = vmatpush.msra.mxu0 %v360
    %390 = vmatpush.msra.mxu0 %v359
    %391 = vmatmul.f32.gmra.mxu0 %v327
    %v392 = vpop.f32.mrf.mxu0
    %v393 = vadd.f32 0.0, %v392
    %394 = vmatmul.f32.gmra.mxu0 %v328
    %v395 = vpop.f32.mrf.mxu0
    %v396 = vadd.f32 0.0, %v395
    %397 = vmatmul.f32.gmra.mxu0 %v329
    %v398 = vpop.f32.mrf.mxu0
    %v399 = vadd.f32 0.0, %v398
    %400 = vmatmul.f32.gmra.mxu0 %v330
    %v401 = vpop.f32.mrf.mxu0
    %v402 = vadd.f32 0.0, %v401
    %403 = vmatmul.f32.gmra.mxu0 %v331
    %v404 = vpop.f32.mrf.mxu0
    %v405 = vadd.f32 0.0, %v404
    %406 = vmatmul.f32.gmra.mxu0 %v332
    %v407 = vpop.f32.mrf.mxu0
    %v408 = vadd.f32 0.0, %v407
    %409 = vmatmul.f32.gmra.mxu0 %v333
    %v410 = vpop.f32.mrf.mxu0
    %v411 = vadd.f32 0.0, %v410
    %412 = vmatmul.f32.gmra.mxu0 %v334
    %v413 = vpop.f32.mrf.mxu0
    %v414 = vadd.f32 0.0, %v413
    %415 = vmatmul.f32.gmra.mxu0 %v335
    %v416 = vpop.f32.mrf.mxu0
    %v417 = vadd.f32 0.0, %v416
    %418 = vmatmul.f32.gmra.mxu0 %v336
    %v419 = vpop.f32.mrf.mxu0
    %v420 = vadd.f32 0.0, %v419
    %421 = vmatmul.f32.gmra.mxu0 %v337
    %v422 = vpop.f32.mrf.mxu0
    %v423 = vadd.f32 0.0, %v422
    %424 = vmatmul.f32.gmra.mxu0 %v338
    %v425 = vpop.f32.mrf.mxu0
    %v426 = vadd.f32 0.0, %v425
    %427 = vmatmul.f32.gmra.mxu0 %v339
    %v428 = vpop.f32.mrf.mxu0
    %v429 = vadd.f32 0.0, %v428
    %430 = vmatmul.f32.gmra.mxu0 %v340
    %v431 = vpop.f32.mrf.mxu0
    %v432 = vadd.f32 0.0, %v431
    %433 = vmatmul.f32.gmra.mxu0 %v341
    %v434 = vpop.f32.mrf.mxu0
    %v435 = vadd.f32 0.0, %v434
    %436 = vmatmul.f32.gmra.mxu0 %v342
    %v437 = vpop.f32.mrf.mxu0
    %v438 = vadd.f32 0.0, %v437
    %439 = vmatmul.f32.gmra.mxu0 %v343
    %v440 = vpop.f32.mrf.mxu0
    %v441 = vadd.f32 0.0, %v440
    %442 = vmatmul.f32.gmra.mxu0 %v344
    %v443 = vpop.f32.mrf.mxu0
    %v444 = vadd.f32 0.0, %v443
    %445 = vmatmul.f32.gmra.mxu0 %v345
    %v446 = vpop.f32.mrf.mxu0
    %v447 = vadd.f32 0.0, %v446
    %448 = vmatmul.f32.gmra.mxu0 %v346
    %v449 = vpop.f32.mrf.mxu0
    %v450 = vadd.f32 0.0, %v449
    %451 = vmatmul.f32.gmra.mxu0 %v347
    %v452 = vpop.f32.mrf.mxu0
    %v453 = vadd.f32 0.0, %v452
    %454 = vmatmul.f32.gmra.mxu0 %v348
    %v455 = vpop.f32.mrf.mxu0
    %v456 = vadd.f32 0.0, %v455
    %457 = vmatmul.f32.gmra.mxu0 %v349
    %v458 = vpop.f32.mrf.mxu0
    %v459 = vadd.f32 0.0, %v458
    %460 = vmatmul.f32.gmra.mxu0 %v350
    %v461 = vpop.f32.mrf.mxu0
    %v462 = vadd.f32 0.0, %v461
    %463 = vmatmul.f32.gmra.mxu0 %v351
    %v464 = vpop.f32.mrf.mxu0
    %v465 = vadd.f32 0.0, %v464
    %466 = vmatmul.f32.gmra.mxu0 %v352
    %v467 = vpop.f32.mrf.mxu0
    %v468 = vadd.f32 0.0, %v467
    %469 = vmatmul.f32.gmra.mxu0 %v353
    %v470 = vpop.f32.mrf.mxu0
    %v471 = vadd.f32 0.0, %v470
    %472 = vmatmul.f32.gmra.mxu0 %v354
    %v473 = vpop.f32.mrf.mxu0
    %v474 = vadd.f32 0.0, %v473
    %475 = vmatmul.f32.gmra.mxu0 %v355
    %v476 = vpop.f32.mrf.mxu0
    %v477 = vadd.f32 0.0, %v476
    %478 = vmatmul.f32.gmra.mxu0 %v356
    %v479 = vpop.f32.mrf.mxu0
    %v480 = vadd.f32 0.0, %v479
    %481 = vmatmul.f32.gmra.mxu0 %v357
    %v482 = vpop.f32.mrf.mxu0
    %v483 = vadd.f32 0.0, %v482
    %484 = vmatmul.f32.gmra.mxu0 %v358
    %v485 = vpop.f32.mrf.mxu0
    %v486 = vadd.f32 0.0, %v485
    %487 = vdwg.mxu0
    %v488 = vld [vmem:[#allocation2] sm:$0xff]
    %v489 = vld [vmem:[#allocation2 + $0x8] sm:$0xff]
    %v490 = vld [vmem:[#allocation2 + $0x10] sm:$0xff]
    %v491 = vld [vmem:[#allocation2 + $0x18] sm:$0xff]
    %v492 = vld [vmem:[#allocation2 + $0x20] sm:$0xff]
    %v493 = vld [vmem:[#allocation2 + $0x28] sm:$0xff]
    %v494 = vld [vmem:[#allocation2 + $0x30] sm:$0xff]
    %v495 = vld [vmem:[#allocation2 + $0x38] sm:$0xff]
    %v496 = vld [vmem:[#allocation2 + $0x40] sm:$0xff]
    %v497 = vld [vmem:[#allocation2 + $0x48] sm:$0xff]
    %v498 = vld [vmem:[#allocation2 + $0x50] sm:$0xff]
    %v499 = vld [vmem:[#allocation2 + $0x58] sm:$0xff]
    %vm500 = vcmask 261120
    %v502 = vsel %vm500, %v393, 0
    %v505 = vsel %vm500, %v396, 0
    %v508 = vsel %vm500, %v399, 0
    %v511 = vsel %vm500, %v402, 0
    %v514 = vsel %vm500, %v405, 0
    %v517 = vsel %vm500, %v408, 0
    %v520 = vsel %vm500, %v411, 0
    %v523 = vsel %vm500, %v414, 0
    %v526 = vsel %vm500, %v417, 0
    %v529 = vsel %vm500, %v420, 0
    %v532 = vsel %vm500, %v423, 0
    %v535 = vsel %vm500, %v426, 0
    %v538 = vsel %vm500, %v429, 0
    %v541 = vsel %vm500, %v432, 0
    %v544 = vsel %vm500, %v435, 0
    %v547 = vsel %vm500, %v438, 0
    %v550 = vsel %vm500, %v441, 0
    %v553 = vsel %vm500, %v444, 0
    %v556 = vsel %vm500, %v447, 0
    %v559 = vsel %vm500, %v450, 0
    %v562 = vsel %vm500, %v453, 0
    %v565 = vsel %vm500, %v456, 0
    %v568 = vsel %vm500, %v459, 0
    %v571 = vsel %vm500, %v462, 0
    %v574 = vsel %vm500, %v465, 0
    %v577 = vsel %vm500, %v468, 0
    %v580 = vsel %vm500, %v471, 0
    %v583 = vsel %vm500, %v474, 0
    %v586 = vsel %vm500, %v477, 0
    %v589 = vsel %vm500, %v480, 0
    %v592 = vsel %vm500, %v483, 0
    %v595 = vsel %vm500, %v486, 0
    %597 = vmatpush.msra.mxu0 0.0
    %598 = vmatpush.msra.mxu0 0.0
    %599 = vmatpush.msra.mxu0 0.0
    %600 = vmatpush.msra.mxu0 0.0
    %601 = vmatpush.msra.mxu0 0.0
    %602 = vmatpush.msra.mxu0 0.0
    %603 = vmatpush.msra.mxu0 0.0
    %604 = vmatpush.msra.mxu0 0.0
    %605 = vmatpush.msra.mxu0 0.0
    %606 = vmatpush.msra.mxu0 0.0
    %607 = vmatpush.msra.mxu0 0.0
    %608 = vmatpush.msra.mxu0 0.0
    %609 = vmatpush.msra.mxu0 %v495
    %610 = vmatpush.msra.mxu0 %v494
    %611 = vmatpush.msra.mxu0 %v493
    %612 = vmatpush.msra.mxu0 %v492
    %613 = vmatmul.f32.gmra.mxu0 %v502
    %v614 = vpop.f32.mrf.mxu0
    %v615 = vadd.f32 0.0, %v614
    %616 = vmatmul.f32.gmra.mxu0 %v505
    %v617 = vpop.f32.mrf.mxu0
    %v618 = vadd.f32 0.0, %v617
    %619 = vmatmul.f32.gmra.mxu0 %v508
    %v620 = vpop.f32.mrf.mxu0
    %v621 = vadd.f32 0.0, %v620
    %622 = vmatmul.f32.gmra.mxu0 %v511
    %v623 = vpop.f32.mrf.mxu0
    %v624 = vadd.f32 0.0, %v623
    %625 = vmatmul.f32.gmra.mxu0 %v514
    %v626 = vpop.f32.mrf.mxu0
    %v627 = vadd.f32 0.0, %v626
    %628 = vmatmul.f32.gmra.mxu0 %v517
    %v629 = vpop.f32.mrf.mxu0
    %v630 = vadd.f32 0.0, %v629
    %631 = vmatmul.f32.gmra.mxu0 %v520
    %v632 = vpop.f32.mrf.mxu0
    %v633 = vadd.f32 0.0, %v632
    %634 = vmatmul.f32.gmra.mxu0 %v523
    %v635 = vpop.f32.mrf.mxu0
    %v636 = vadd.f32 0.0, %v635
    %637 = vmatmul.f32.gmra.mxu0 %v526
    %v638 = vpop.f32.mrf.mxu0
    %v639 = vadd.f32 0.0, %v638
    %640 = vmatmul.f32.gmra.mxu0 %v529
    %v641 = vpop.f32.mrf.mxu0
    %v642 = vadd.f32 0.0, %v641
    %643 = vmatmul.f32.gmra.mxu0 %v532
    %v644 = vpop.f32.mrf.mxu0
    %v645 = vadd.f32 0.0, %v644
    %646 = vmatmul.f32.gmra.mxu0 %v535
    %v647 = vpop.f32.mrf.mxu0
    %v648 = vadd.f32 0.0, %v647
    %649 = vmatmul.f32.gmra.mxu0 %v538
    %v650 = vpop.f32.mrf.mxu0
    %v651 = vadd.f32 0.0, %v650
    %652 = vmatmul.f32.gmra.mxu0 %v541
    %v653 = vpop.f32.mrf.mxu0
    %v654 = vadd.f32 0.0, %v653
    %655 = vmatmul.f32.gmra.mxu0 %v544
    %v656 = vpop.f32.mrf.mxu0
    %v657 = vadd.f32 0.0, %v656
    %658 = vmatmul.f32.gmra.mxu0 %v547
    %v659 = vpop.f32.mrf.mxu0
    %v660 = vadd.f32 0.0, %v659
    %661 = vmatmul.f32.gmra.mxu0 %v550
    %v662 = vpop.f32.mrf.mxu0
    %v663 = vadd.f32 0.0, %v662
    %664 = vmatmul.f32.gmra.mxu0 %v553
    %v665 = vpop.f32.mrf.mxu0
    %v666 = vadd.f32 0.0, %v665
    %667 = vmatmul.f32.gmra.mxu0 %v556
    %v668 = vpop.f32.mrf.mxu0
    %v669 = vadd.f32 0.0, %v668
    %670 = vmatmul.f32.gmra.mxu0 %v559
    %v671 = vpop.f32.mrf.mxu0
    %v672 = vadd.f32 0.0, %v671
    %673 = vmatmul.f32.gmra.mxu0 %v562
    %v674 = vpop.f32.mrf.mxu0
    %v675 = vadd.f32 0.0, %v674
    %676 = vmatmul.f32.gmra.mxu0 %v565
    %v677 = vpop.f32.mrf.mxu0
    %v678 = vadd.f32 0.0, %v677
    %679 = vmatmul.f32.gmra.mxu0 %v568
    %v680 = vpop.f32.mrf.mxu0
    %v681 = vadd.f32 0.0, %v680
    %682 = vmatmul.f32.gmra.mxu0 %v571
    %v683 = vpop.f32.mrf.mxu0
    %v684 = vadd.f32 0.0, %v683
    %685 = vmatmul.f32.gmra.mxu0 %v574
    %v686 = vpop.f32.mrf.mxu0
    %v687 = vadd.f32 0.0, %v686
    %688 = vmatmul.f32.gmra.mxu0 %v577
    %v689 = vpop.f32.mrf.mxu0
    %v690 = vadd.f32 0.0, %v689
    %691 = vmatmul.f32.gmra.mxu0 %v580
    %v692 = vpop.f32.mrf.mxu0
    %v693 = vadd.f32 0.0, %v692
    %694 = vmatmul.f32.gmra.mxu0 %v583
    %v695 = vpop.f32.mrf.mxu0
    %v696 = vadd.f32 0.0, %v695
    %697 = vmatmul.f32.gmra.mxu0 %v586
    %v698 = vpop.f32.mrf.mxu0
    %v699 = vadd.f32 0.0, %v698
    %700 = vmatmul.f32.gmra.mxu0 %v589
    %v701 = vpop.f32.mrf.mxu0
    %v702 = vadd.f32 0.0, %v701
    %703 = vmatmul.f32.gmra.mxu0 %v592
    %v704 = vpop.f32.mrf.mxu0
    %v705 = vadd.f32 0.0, %v704
    %706 = vmatmul.f32.gmra.mxu0 %v595
    %v707 = vpop.f32.mrf.mxu0
    %v708 = vadd.f32 0.0, %v707
    %709 = vdwg.mxu0
    %v711 = vsel %vm500, 0.0, 0
    %713 = vmatpush.msra.mxu0 0.0
    %714 = vmatpush.msra.mxu0 0.0
    %715 = vmatpush.msra.mxu0 0.0
    %716 = vmatpush.msra.mxu0 0.0
    %717 = vmatpush.msra.mxu0 0.0
    %718 = vmatpush.msra.mxu0 0.0
    %719 = vmatpush.msra.mxu0 0.0
    %720 = vmatpush.msra.mxu0 0.0
    %721 = vmatpush.msra.mxu0 0.0
    %722 = vmatpush.msra.mxu0 0.0
    %723 = vmatpush.msra.mxu0 0.0
    %724 = vmatpush.msra.mxu0 0.0
    %725 = vmatpush.msra.mxu0 %v491
    %726 = vmatpush.msra.mxu0 %v490
    %727 = vmatpush.msra.mxu0 %v489
    %728 = vmatpush.msra.mxu0 %v488
    %729 = vmatmul.f32.gmra.mxu0 %v711
    %v730 = vpop.f32.mrf.mxu0
    %v731 = vadd.f32 %v615, %v730
    %732 = vmatmul.f32.gmra.mxu0 %v711
    %v733 = vpop.f32.mrf.mxu0
    %v734 = vadd.f32 %v618, %v733
    %735 = vmatmul.f32.gmra.mxu0 %v502
    %v736 = vpop.f32.mrf.mxu0
    %v737 = vadd.f32 %v621, %v736
    %738 = vmatmul.f32.gmra.mxu0 %v505
    %v739 = vpop.f32.mrf.mxu0
    %v740 = vadd.f32 %v624, %v739
    %741 = vmatmul.f32.gmra.mxu0 %v508
    %v742 = vpop.f32.mrf.mxu0
    %v743 = vadd.f32 %v627, %v742
    %744 = vmatmul.f32.gmra.mxu0 %v511
    %v745 = vpop.f32.mrf.mxu0
    %v746 = vadd.f32 %v630, %v745
    %747 = vmatmul.f32.gmra.mxu0 %v514
    %v748 = vpop.f32.mrf.mxu0
    %v749 = vadd.f32 %v633, %v748
    %750 = vmatmul.f32.gmra.mxu0 %v517
    %v751 = vpop.f32.mrf.mxu0
    %v752 = vadd.f32 %v636, %v751
    %753 = vmatmul.f32.gmra.mxu0 %v520
    %v754 = vpop.f32.mrf.mxu0
    %v755 = vadd.f32 %v639, %v754
    %756 = vmatmul.f32.gmra.mxu0 %v523
    %v757 = vpop.f32.mrf.mxu0
    %v758 = vadd.f32 %v642, %v757
    %759 = vmatmul.f32.gmra.mxu0 %v526
    %v760 = vpop.f32.mrf.mxu0
    %v761 = vadd.f32 %v645, %v760
    %762 = vmatmul.f32.gmra.mxu0 %v529
    %v763 = vpop.f32.mrf.mxu0
    %v764 = vadd.f32 %v648, %v763
    %765 = vmatmul.f32.gmra.mxu0 %v532
    %v766 = vpop.f32.mrf.mxu0
    %v767 = vadd.f32 %v651, %v766
    %768 = vmatmul.f32.gmra.mxu0 %v535
    %v769 = vpop.f32.mrf.mxu0
    %v770 = vadd.f32 %v654, %v769
    %771 = vmatmul.f32.gmra.mxu0 %v538
    %v772 = vpop.f32.mrf.mxu0
    %v773 = vadd.f32 %v657, %v772
    %774 = vmatmul.f32.gmra.mxu0 %v541
    %v775 = vpop.f32.mrf.mxu0
    %v776 = vadd.f32 %v660, %v775
    %777 = vmatmul.f32.gmra.mxu0 %v544
    %v778 = vpop.f32.mrf.mxu0
    %v779 = vadd.f32 %v663, %v778
    %780 = vmatmul.f32.gmra.mxu0 %v547
    %v781 = vpop.f32.mrf.mxu0
    %v782 = vadd.f32 %v666, %v781
    %783 = vmatmul.f32.gmra.mxu0 %v550
    %v784 = vpop.f32.mrf.mxu0
    %v785 = vadd.f32 %v669, %v784
    %786 = vmatmul.f32.gmra.mxu0 %v553
    %v787 = vpop.f32.mrf.mxu0
    %v788 = vadd.f32 %v672, %v787
    %789 = vmatmul.f32.gmra.mxu0 %v556
    %v790 = vpop.f32.mrf.mxu0
    %v791 = vadd.f32 %v675, %v790
    %792 = vmatmul.f32.gmra.mxu0 %v559
    %v793 = vpop.f32.mrf.mxu0
    %v794 = vadd.f32 %v678, %v793
    %795 = vmatmul.f32.gmra.mxu0 %v562
    %v796 = vpop.f32.mrf.mxu0
    %v797 = vadd.f32 %v681, %v796
    %798 = vmatmul.f32.gmra.mxu0 %v565
    %v799 = vpop.f32.mrf.mxu0
    %v800 = vadd.f32 %v684, %v799
    %801 = vmatmul.f32.gmra.mxu0 %v568
    %v802 = vpop.f32.mrf.mxu0
    %v803 = vadd.f32 %v687, %v802
    %804 = vmatmul.f32.gmra.mxu0 %v571
    %v805 = vpop.f32.mrf.mxu0
    %v806 = vadd.f32 %v690, %v805
    %807 = vmatmul.f32.gmra.mxu0 %v574
    %v808 = vpop.f32.mrf.mxu0
    %v809 = vadd.f32 %v693, %v808
    %810 = vmatmul.f32.gmra.mxu0 %v577
    %v811 = vpop.f32.mrf.mxu0
    %v812 = vadd.f32 %v696, %v811
    %813 = vmatmul.f32.gmra.mxu0 %v580
    %v814 = vpop.f32.mrf.mxu0
    %v815 = vadd.f32 %v699, %v814
    %816 = vmatmul.f32.gmra.mxu0 %v583
    %v817 = vpop.f32.mrf.mxu0
    %v818 = vadd.f32 %v702, %v817
    %819 = vmatmul.f32.gmra.mxu0 %v586
    %v820 = vpop.f32.mrf.mxu0
    %v821 = vadd.f32 %v705, %v820
    %822 = vmatmul.f32.gmra.mxu0 %v589
    %v823 = vpop.f32.mrf.mxu0
    %v824 = vadd.f32 %v708, %v823
    %825 = vdwg.mxu0
    %826 = vmatpush.msra.mxu0 0.0
    %827 = vmatpush.msra.mxu0 0.0
    %828 = vmatpush.msra.mxu0 0.0
    %829 = vmatpush.msra.mxu0 0.0
    %830 = vmatpush.msra.mxu0 0.0
    %831 = vmatpush.msra.mxu0 0.0
    %832 = vmatpush.msra.mxu0 0.0
    %833 = vmatpush.msra.mxu0 0.0
    %834 = vmatpush.msra.mxu0 0.0
    %835 = vmatpush.msra.mxu0 0.0
    %836 = vmatpush.msra.mxu0 0.0
    %837 = vmatpush.msra.mxu0 0.0
    %838 = vmatpush.msra.mxu0 %v499
    %839 = vmatpush.msra.mxu0 %v498
    %840 = vmatpush.msra.mxu0 %v497
    %841 = vmatpush.msra.mxu0 %v496
    %842 = vmatmul.f32.gmra.mxu0 %v508
    %v843 = vpop.f32.mrf.mxu0
    %v844 = vadd.f32 0.0, %v843
    %845 = vmatmul.f32.gmra.mxu0 %v511
    %v846 = vpop.f32.mrf.mxu0
    %v847 = vadd.f32 0.0, %v846
    %848 = vmatmul.f32.gmra.mxu0 %v514
    %v849 = vpop.f32.mrf.mxu0
    %v850 = vadd.f32 0.0, %v849
    %851 = vmatmul.f32.gmra.mxu0 %v517
    %v852 = vpop.f32.mrf.mxu0
    %v853 = vadd.f32 0.0, %v852
    %854 = vmatmul.f32.gmra.mxu0 %v520
    %v855 = vpop.f32.mrf.mxu0
    %v856 = vadd.f32 0.0, %v855
    %857 = vmatmul.f32.gmra.mxu0 %v523
    %v858 = vpop.f32.mrf.mxu0
    %v859 = vadd.f32 0.0, %v858
    %860 = vmatmul.f32.gmra.mxu0 %v526
    %v861 = vpop.f32.mrf.mxu0
    %v862 = vadd.f32 0.0, %v861
    %863 = vmatmul.f32.gmra.mxu0 %v529
    %v864 = vpop.f32.mrf.mxu0
    %v865 = vadd.f32 0.0, %v864
    %866 = vmatmul.f32.gmra.mxu0 %v532
    %v867 = vpop.f32.mrf.mxu0
    %v868 = vadd.f32 0.0, %v867
    %869 = vmatmul.f32.gmra.mxu0 %v535
    %v870 = vpop.f32.mrf.mxu0
    %v871 = vadd.f32 0.0, %v870
    %872 = vmatmul.f32.gmra.mxu0 %v538
    %v873 = vpop.f32.mrf.mxu0
    %v874 = vadd.f32 0.0, %v873
    %875 = vmatmul.f32.gmra.mxu0 %v541
    %v876 = vpop.f32.mrf.mxu0
    %v877 = vadd.f32 0.0, %v876
    %878 = vmatmul.f32.gmra.mxu0 %v544
    %v879 = vpop.f32.mrf.mxu0
    %v880 = vadd.f32 0.0, %v879
    %881 = vmatmul.f32.gmra.mxu0 %v547
    %v882 = vpop.f32.mrf.mxu0
    %v883 = vadd.f32 0.0, %v882
    %884 = vmatmul.f32.gmra.mxu0 %v550
    %v885 = vpop.f32.mrf.mxu0
    %v886 = vadd.f32 0.0, %v885
    %887 = vmatmul.f32.gmra.mxu0 %v553
    %v888 = vpop.f32.mrf.mxu0
    %v889 = vadd.f32 0.0, %v888
    %890 = vmatmul.f32.gmra.mxu0 %v556
    %v891 = vpop.f32.mrf.mxu0
    %v892 = vadd.f32 0.0, %v891
    %893 = vmatmul.f32.gmra.mxu0 %v559
    %v894 = vpop.f32.mrf.mxu0
    %v895 = vadd.f32 0.0, %v894
    %896 = vmatmul.f32.gmra.mxu0 %v562
    %v897 = vpop.f32.mrf.mxu0
    %v898 = vadd.f32 0.0, %v897
    %899 = vmatmul.f32.gmra.mxu0 %v565
    %v900 = vpop.f32.mrf.mxu0
    %v901 = vadd.f32 0.0, %v900
    %902 = vmatmul.f32.gmra.mxu0 %v568
    %v903 = vpop.f32.mrf.mxu0
    %v904 = vadd.f32 0.0, %v903
    %905 = vmatmul.f32.gmra.mxu0 %v571
    %v906 = vpop.f32.mrf.mxu0
    %v907 = vadd.f32 0.0, %v906
    %908 = vmatmul.f32.gmra.mxu0 %v574
    %v909 = vpop.f32.mrf.mxu0
    %v910 = vadd.f32 0.0, %v909
    %911 = vmatmul.f32.gmra.mxu0 %v577
    %v912 = vpop.f32.mrf.mxu0
    %v913 = vadd.f32 0.0, %v912
    %914 = vmatmul.f32.gmra.mxu0 %v580
    %v915 = vpop.f32.mrf.mxu0
    %v916 = vadd.f32 0.0, %v915
    %917 = vmatmul.f32.gmra.mxu0 %v583
    %v918 = vpop.f32.mrf.mxu0
    %v919 = vadd.f32 0.0, %v918
    %920 = vmatmul.f32.gmra.mxu0 %v586
    %v921 = vpop.f32.mrf.mxu0
    %v922 = vadd.f32 0.0, %v921
    %923 = vmatmul.f32.gmra.mxu0 %v589
    %v924 = vpop.f32.mrf.mxu0
    %v925 = vadd.f32 0.0, %v924
    %926 = vmatmul.f32.gmra.mxu0 %v592
    %v927 = vpop.f32.mrf.mxu0
    %v928 = vadd.f32 0.0, %v927
    %929 = vmatmul.f32.gmra.mxu0 %v595
    %v930 = vpop.f32.mrf.mxu0
    %v931 = vadd.f32 0.0, %v930
    %932 = vmatmul.f32.gmra.mxu0 %v711
    %v933 = vpop.f32.mrf.mxu0
    %v934 = vadd.f32 0.0, %v933
    %935 = vmatmul.f32.gmra.mxu0 %v711
    %v936 = vpop.f32.mrf.mxu0
    %v937 = vadd.f32 0.0, %v936
    %938 = vdwg.mxu0
    %v939 = vadd.f32 %v731, %v844
    %v940 = vadd.f32 %v734, %v847
    %v941 = vadd.f32 %v737, %v850
    %v942 = vadd.f32 %v740, %v853
    %v943 = vadd.f32 %v743, %v856
    %v944 = vadd.f32 %v746, %v859
    %v945 = vadd.f32 %v749, %v862
    %v946 = vadd.f32 %v752, %v865
    %v947 = vadd.f32 %v755, %v868
    %v948 = vadd.f32 %v758, %v871
    %v949 = vadd.f32 %v761, %v874
    %v950 = vadd.f32 %v764, %v877
    %v951 = vadd.f32 %v767, %v880
    %v952 = vadd.f32 %v770, %v883
    %v953 = vadd.f32 %v773, %v886
    %v954 = vadd.f32 %v776, %v889
    %v955 = vadd.f32 %v779, %v892
    %v956 = vadd.f32 %v782, %v895
    %v957 = vadd.f32 %v785, %v898
    %v958 = vadd.f32 %v788, %v901
    %v959 = vadd.f32 %v791, %v904
    %v960 = vadd.f32 %v794, %v907
    %v961 = vadd.f32 %v797, %v910
    %v962 = vadd.f32 %v800, %v913
    %v963 = vadd.f32 %v803, %v916
    %v964 = vadd.f32 %v806, %v919
    %v965 = vadd.f32 %v809, %v922
    %v966 = vadd.f32 %v812, %v925
    %v967 = vadd.f32 %v815, %v928
    %v968 = vadd.f32 %v818, %v931
    %v969 = vadd.f32 %v821, %v934
    %v970 = vadd.f32 %v824, %v937
    %v971 = vld [vmem:[%s3] sm:$0x1]
    %v973 = vperm.slane %v971, 0
    %v975 = vadd.f32 %v939, %v973
    %v976 = vadd.f32 %v940, %v973
    %v977 = vadd.f32 %v941, %v973
    %v978 = vadd.f32 %v942, %v973
    %v979 = vadd.f32 %v943, %v973
    %v980 = vadd.f32 %v944, %v973
    %v981 = vadd.f32 %v945, %v973
    %v982 = vadd.f32 %v946, %v973
    %v983 = vadd.f32 %v947, %v973
    %v984 = vadd.f32 %v948, %v973
    %v985 = vadd.f32 %v949, %v973
    %v986 = vadd.f32 %v950, %v973
    %v987 = vadd.f32 %v951, %v973
    %v988 = vadd.f32 %v952, %v973
    %v989 = vadd.f32 %v953, %v973
    %v990 = vadd.f32 %v954, %v973
    %v991 = vadd.f32 %v955, %v973
    %v992 = vadd.f32 %v956, %v973
    %v993 = vadd.f32 %v957, %v973
    %v994 = vadd.f32 %v958, %v973
    %v995 = vadd.f32 %v959, %v973
    %v996 = vadd.f32 %v960, %v973
    %v997 = vadd.f32 %v961, %v973
    %v998 = vadd.f32 %v962, %v973
    %v999 = vadd.f32 %v963, %v973
    %v1000 = vadd.f32 %v964, %v973
    %v1001 = vadd.f32 %v965, %v973
    %v1002 = vadd.f32 %v966, %v973
    %v1003 = vadd.f32 %v967, %v973
    %v1004 = vadd.f32 %v968, %v973
    %v1005 = vadd.f32 %v969, %v973
    %v1006 = vadd.f32 %v970, %v973
    %v1007 = vmax.f32 %v975, 0.0
    %v1008 = vmax.f32 %v976, 0.0
    %v1009 = vmax.f32 %v977, 0.0
    %v1010 = vmax.f32 %v978, 0.0
    %v1011 = vmax.f32 %v979, 0.0
    %v1012 = vmax.f32 %v980, 0.0
    %v1013 = vmax.f32 %v981, 0.0
    %v1014 = vmax.f32 %v982, 0.0
    %v1015 = vmax.f32 %v983, 0.0
    %v1016 = vmax.f32 %v984, 0.0
    %v1017 = vmax.f32 %v985, 0.0
    %v1018 = vmax.f32 %v986, 0.0
    %v1019 = vmax.f32 %v987, 0.0
    %v1020 = vmax.f32 %v988, 0.0
    %v1021 = vmax.f32 %v989, 0.0
    %v1022 = vmax.f32 %v990, 0.0
    %v1023 = vmax.f32 %v991, 0.0
    %v1024 = vmax.f32 %v992, 0.0
    %v1025 = vmax.f32 %v993, 0.0
    %v1026 = vmax.f32 %v994, 0.0
    %v1027 = vmax.f32 %v995, 0.0
    %v1028 = vmax.f32 %v996, 0.0
    %v1029 = vmax.f32 %v997, 0.0
    %v1030 = vmax.f32 %v998, 0.0
    %v1031 = vmax.f32 %v999, 0.0
    %v1032 = vmax.f32 %v1000, 0.0
    %v1033 = vmax.f32 %v1001, 0.0
    %v1034 = vmax.f32 %v1002, 0.0
    %v1035 = vmax.f32 %v1003, 0.0
    %v1036 = vmax.f32 %v1004, 0.0
    %v1037 = vmax.f32 %v1005, 0.0
    %v1038 = vmax.f32 %v1006, 0.0
    %v1039 = vsel %vm500, %v1007, -inf
    %v1040 = vsel %vm500, %v1009, -inf
    %v1041 = vmax.f32 %v1039, %v1040
    %v1042 = vsel %vm500, %v1008, -inf
    %v1043 = vsel %vm500, %v1010, -inf
    %v1044 = vmax.f32 %v1042, %v1043
    %v1045 = vsel %vm500, %v1011, -inf
    %v1046 = vsel %vm500, %v1013, -inf
    %v1047 = vmax.f32 %v1045, %v1046
    %v1048 = vsel %vm500, %v1012, -inf
    %v1049 = vsel %vm500, %v1014, -inf
    %v1050 = vmax.f32 %v1048, %v1049
    %v1051 = vsel %vm500, %v1015, -inf
    %v1052 = vsel %vm500, %v1017, -inf
    %v1053 = vmax.f32 %v1051, %v1052
    %v1054 = vsel %vm500, %v1016, -inf
    %v1055 = vsel %vm500, %v1018, -inf
    %v1056 = vmax.f32 %v1054, %v1055
    %v1057 = vsel %vm500, %v1019, -inf
    %v1058 = vsel %vm500, %v1021, -inf
    %v1059 = vmax.f32 %v1057, %v1058
    %v1060 = vsel %vm500, %v1020, -inf
    %v1061 = vsel %vm500, %v1022, -inf
    %v1062 = vmax.f32 %v1060, %v1061
    %v1063 = vsel %vm500, %v1023, -inf
    %v1064 = vsel %vm500, %v1025, -inf
    %v1065 = vmax.f32 %v1063, %v1064
    %v1066 = vsel %vm500, %v1024, -inf
    %v1067 = vsel %vm500, %v1026, -inf
    %v1068 = vmax.f32 %v1066, %v1067
    %v1069 = vsel %vm500, %v1027, -inf
    %v1070 = vsel %vm500, %v1029, -inf
    %v1071 = vmax.f32 %v1069, %v1070
    %v1072 = vsel %vm500, %v1028, -inf
    %v1073 = vsel %vm500, %v1030, -inf
    %v1074 = vmax.f32 %v1072, %v1073
    %v1075 = vsel %vm500, %v1031, -inf
    %v1076 = vsel %vm500, %v1033, -inf
    %v1077 = vmax.f32 %v1075, %v1076
    %v1078 = vsel %vm500, %v1032, -inf
    %v1079 = vsel %vm500, %v1034, -inf
    %v1080 = vmax.f32 %v1078, %v1079
    %v1081 = vsel %vm500, %v1035, -inf
    %v1082 = vsel %vm500, %v1037, -inf
    %v1083 = vmax.f32 %v1081, %v1082
    %v1084 = vsel %vm500, %v1036, -inf
    %v1085 = vsel %vm500, %v1038, -inf
    %v1086 = vmax.f32 %v1084, %v1085
    %v1087 = vld [vmem:[#allocation5] sm:$0xff]
    %v1088 = vld [vmem:[#allocation5 + $0x8] sm:$0xff]
    %v1089 = vld [vmem:[#allocation5 + $0x10] sm:$0xff]
    %v1090 = vld [vmem:[#allocation5 + $0x18] sm:$0xff]
    %v1091 = vld [vmem:[#allocation5 + $0x20] sm:$0xff]
    %v1092 = vld [vmem:[#allocation5 + $0x28] sm:$0xff]
    %v1093 = vld [vmem:[#allocation5 + $0x30] sm:$0xff]
    %v1094 = vld [vmem:[#allocation5 + $0x38] sm:$0xff]
    %v1095 = vld [vmem:[#allocation5 + $0x40] sm:$0xff]
    %v1096 = vld [vmem:[#allocation5 + $0x48] sm:$0xff]
    %v1097 = vld [vmem:[#allocation5 + $0x50] sm:$0xff]
    %v1098 = vld [vmem:[#allocation5 + $0x58] sm:$0xff]
    %v1100 = vsel %vm500, %v1041, 0
    %v1103 = vsel %vm500, %v1044, 0
    %v1106 = vsel %vm500, %v1047, 0
    %v1109 = vsel %vm500, %v1050, 0
    %v1112 = vsel %vm500, %v1053, 0
    %v1115 = vsel %vm500, %v1056, 0
    %v1118 = vsel %vm500, %v1059, 0
    %v1121 = vsel %vm500, %v1062, 0
    %v1124 = vsel %vm500, %v1065, 0
    %v1127 = vsel %vm500, %v1068, 0
    %v1130 = vsel %vm500, %v1071, 0
    %v1133 = vsel %vm500, %v1074, 0
    %v1136 = vsel %vm500, %v1077, 0
    %v1139 = vsel %vm500, %v1080, 0
    %v1142 = vsel %vm500, %v1083, 0
    %v1145 = vsel %vm500, %v1086, 0
    %1147 = vmatpush.msra.mxu0 0.0
    %1148 = vmatpush.msra.mxu0 0.0
    %1149 = vmatpush.msra.mxu0 0.0
    %1150 = vmatpush.msra.mxu0 0.0
    %1151 = vmatpush.msra.mxu0 0.0
    %1152 = vmatpush.msra.mxu0 0.0
    %1153 = vmatpush.msra.mxu0 0.0
    %1154 = vmatpush.msra.mxu0 0.0
    %1155 = vmatpush.msra.mxu0 0.0
    %1156 = vmatpush.msra.mxu0 0.0
    %1157 = vmatpush.msra.mxu0 0.0
    %1158 = vmatpush.msra.mxu0 0.0
    %1159 = vmatpush.msra.mxu0 %v1094
    %1160 = vmatpush.msra.mxu0 %v1093
    %1161 = vmatpush.msra.mxu0 %v1092
    %1162 = vmatpush.msra.mxu0 %v1091
    %1163 = vmatmul.f32.gmra.mxu0 %v1100
    %v1164 = vpop.f32.mrf.mxu0
    %v1165 = vadd.f32 0.0, %v1164
    %1166 = vmatmul.f32.gmra.mxu0 %v1103
    %v1167 = vpop.f32.mrf.mxu0
    %v1168 = vadd.f32 0.0, %v1167
    %1169 = vmatmul.f32.gmra.mxu0 %v1106
    %v1170 = vpop.f32.mrf.mxu0
    %v1171 = vadd.f32 0.0, %v1170
    %1172 = vmatmul.f32.gmra.mxu0 %v1109
    %v1173 = vpop.f32.mrf.mxu0
    %v1174 = vadd.f32 0.0, %v1173
    %1175 = vmatmul.f32.gmra.mxu0 %v1112
    %v1176 = vpop.f32.mrf.mxu0
    %v1177 = vadd.f32 0.0, %v1176
    %1178 = vmatmul.f32.gmra.mxu0 %v1115
    %v1179 = vpop.f32.mrf.mxu0
    %v1180 = vadd.f32 0.0, %v1179
    %1181 = vmatmul.f32.gmra.mxu0 %v1118
    %v1182 = vpop.f32.mrf.mxu0
    %v1183 = vadd.f32 0.0, %v1182
    %1184 = vmatmul.f32.gmra.mxu0 %v1121
    %v1185 = vpop.f32.mrf.mxu0
    %v1186 = vadd.f32 0.0, %v1185
    %1187 = vmatmul.f32.gmra.mxu0 %v1124
    %v1188 = vpop.f32.mrf.mxu0
    %v1189 = vadd.f32 0.0, %v1188
    %1190 = vmatmul.f32.gmra.mxu0 %v1127
    %v1191 = vpop.f32.mrf.mxu0
    %v1192 = vadd.f32 0.0, %v1191
    %1193 = vmatmul.f32.gmra.mxu0 %v1130
    %v1194 = vpop.f32.mrf.mxu0
    %v1195 = vadd.f32 0.0, %v1194
    %1196 = vmatmul.f32.gmra.mxu0 %v1133
    %v1197 = vpop.f32.mrf.mxu0
    %v1198 = vadd.f32 0.0, %v1197
    %1199 = vmatmul.f32.gmra.mxu0 %v1136
    %v1200 = vpop.f32.mrf.mxu0
    %v1201 = vadd.f32 0.0, %v1200
    %1202 = vmatmul.f32.gmra.mxu0 %v1139
    %v1203 = vpop.f32.mrf.mxu0
    %v1204 = vadd.f32 0.0, %v1203
    %1205 = vmatmul.f32.gmra.mxu0 %v1142
    %v1206 = vpop.f32.mrf.mxu0
    %v1207 = vadd.f32 0.0, %v1206
    %1208 = vmatmul.f32.gmra.mxu0 %v1145
    %v1209 = vpop.f32.mrf.mxu0
    %v1210 = vadd.f32 0.0, %v1209
    %1211 = vdwg.mxu0
    %1212 = vmatpush.msra.mxu0 0.0
    %1213 = vmatpush.msra.mxu0 0.0
    %1214 = vmatpush.msra.mxu0 0.0
    %1215 = vmatpush.msra.mxu0 0.0
    %1216 = vmatpush.msra.mxu0 0.0
    %1217 = vmatpush.msra.mxu0 0.0
    %1218 = vmatpush.msra.mxu0 0.0
    %1219 = vmatpush.msra.mxu0 0.0
    %1220 = vmatpush.msra.mxu0 0.0
    %1221 = vmatpush.msra.mxu0 0.0
    %1222 = vmatpush.msra.mxu0 0.0
    %1223 = vmatpush.msra.mxu0 0.0
    %1224 = vmatpush.msra.mxu0 %v1090
    %1225 = vmatpush.msra.mxu0 %v1089
    %1226 = vmatpush.msra.mxu0 %v1088
    %1227 = vmatpush.msra.mxu0 %v1087
    %1228 = vmatmul.f32.gmra.mxu0 %v711
    %v1229 = vpop.f32.mrf.mxu0
    %v1230 = vadd.f32 %v1165, %v1229
    %1231 = vmatmul.f32.gmra.mxu0 %v711
    %v1232 = vpop.f32.mrf.mxu0
    %v1233 = vadd.f32 %v1168, %v1232
    %1234 = vmatmul.f32.gmra.mxu0 %v1100
    %v1235 = vpop.f32.mrf.mxu0
    %v1236 = vadd.f32 %v1171, %v1235
    %1237 = vmatmul.f32.gmra.mxu0 %v1103
    %v1238 = vpop.f32.mrf.mxu0
    %v1239 = vadd.f32 %v1174, %v1238
    %1240 = vmatmul.f32.gmra.mxu0 %v1106
    %v1241 = vpop.f32.mrf.mxu0
    %v1242 = vadd.f32 %v1177, %v1241
    %1243 = vmatmul.f32.gmra.mxu0 %v1109
    %v1244 = vpop.f32.mrf.mxu0
    %v1245 = vadd.f32 %v1180, %v1244
    %1246 = vmatmul.f32.gmra.mxu0 %v1112
    %v1247 = vpop.f32.mrf.mxu0
    %v1248 = vadd.f32 %v1183, %v1247
    %1249 = vmatmul.f32.gmra.mxu0 %v1115
    %v1250 = vpop.f32.mrf.mxu0
    %v1251 = vadd.f32 %v1186, %v1250
    %1252 = vmatmul.f32.gmra.mxu0 %v1118
    %v1253 = vpop.f32.mrf.mxu0
    %v1254 = vadd.f32 %v1189, %v1253
    %1255 = vmatmul.f32.gmra.mxu0 %v1121
    %v1256 = vpop.f32.mrf.mxu0
    %v1257 = vadd.f32 %v1192, %v1256
    %1258 = vmatmul.f32.gmra.mxu0 %v1124
    %v1259 = vpop.f32.mrf.mxu0
    %v1260 = vadd.f32 %v1195, %v1259
    %1261 = vmatmul.f32.gmra.mxu0 %v1127
    %v1262 = vpop.f32.mrf.mxu0
    %v1263 = vadd.f32 %v1198, %v1262
    %1264 = vmatmul.f32.gmra.mxu0 %v1130
    %v1265 = vpop.f32.mrf.mxu0
    %v1266 = vadd.f32 %v1201, %v1265
    %1267 = vmatmul.f32.gmra.mxu0 %v1133
    %v1268 = vpop.f32.mrf.mxu0
    %v1269 = vadd.f32 %v1204, %v1268
    %1270 = vmatmul.f32.gmra.mxu0 %v1136
    %v1271 = vpop.f32.mrf.mxu0
    %v1272 = vadd.f32 %v1207, %v1271
    %1273 = vmatmul.f32.gmra.mxu0 %v1139
    %v1274 = vpop.f32.mrf.mxu0
    %v1275 = vadd.f32 %v1210, %v1274
    %1276 = vdwg.mxu0
    %1277 = vmatpush.msra.mxu0 0.0
    %1278 = vmatpush.msra.mxu0 0.0
    %1279 = vmatpush.msra.mxu0 0.0
    %1280 = vmatpush.msra.mxu0 0.0
    %1281 = vmatpush.msra.mxu0 0.0
    %1282 = vmatpush.msra.mxu0 0.0
    %1283 = vmatpush.msra.mxu0 0.0
    %1284 = vmatpush.msra.mxu0 0.0
    %1285 = vmatpush.msra.mxu0 0.0
    %1286 = vmatpush.msra.mxu0 0.0
    %1287 = vmatpush.msra.mxu0 0.0
    %1288 = vmatpush.msra.mxu0 0.0
    %1289 = vmatpush.msra.mxu0 %v1098
    %1290 = vmatpush.msra.mxu0 %v1097
    %1291 = vmatpush.msra.mxu0 %v1096
    %1292 = vmatpush.msra.mxu0 %v1095
    %1293 = vmatmul.f32.gmra.mxu0 %v1106
    %v1294 = vpop.f32.mrf.mxu0
    %v1295 = vadd.f32 0.0, %v1294
    %1296 = vmatmul.f32.gmra.mxu0 %v1109
    %v1297 = vpop.f32.mrf.mxu0
    %v1298 = vadd.f32 0.0, %v1297
    %1299 = vmatmul.f32.gmra.mxu0 %v1112
    %v1300 = vpop.f32.mrf.mxu0
    %v1301 = vadd.f32 0.0, %v1300
    %1302 = vmatmul.f32.gmra.mxu0 %v1115
    %v1303 = vpop.f32.mrf.mxu0
    %v1304 = vadd.f32 0.0, %v1303
    %1305 = vmatmul.f32.gmra.mxu0 %v1118
    %v1306 = vpop.f32.mrf.mxu0
    %v1307 = vadd.f32 0.0, %v1306
    %1308 = vmatmul.f32.gmra.mxu0 %v1121
    %v1309 = vpop.f32.mrf.mxu0
    %v1310 = vadd.f32 0.0, %v1309
    %1311 = vmatmul.f32.gmra.mxu0 %v1124
    %v1312 = vpop.f32.mrf.mxu0
    %v1313 = vadd.f32 0.0, %v1312
    %1314 = vmatmul.f32.gmra.mxu0 %v1127
    %v1315 = vpop.f32.mrf.mxu0
    %v1316 = vadd.f32 0.0, %v1315
    %1317 = vmatmul.f32.gmra.mxu0 %v1130
    %v1318 = vpop.f32.mrf.mxu0
    %v1319 = vadd.f32 0.0, %v1318
    %1320 = vmatmul.f32.gmra.mxu0 %v1133
    %v1321 = vpop.f32.mrf.mxu0
    %v1322 = vadd.f32 0.0, %v1321
    %1323 = vmatmul.f32.gmra.mxu0 %v1136
    %v1324 = vpop.f32.mrf.mxu0
    %v1325 = vadd.f32 0.0, %v1324
    %1326 = vmatmul.f32.gmra.mxu0 %v1139
    %v1327 = vpop.f32.mrf.mxu0
    %v1328 = vadd.f32 0.0, %v1327
    %1329 = vmatmul.f32.gmra.mxu0 %v1142
    %v1330 = vpop.f32.mrf.mxu0
    %v1331 = vadd.f32 0.0, %v1330
    %1332 = vmatmul.f32.gmra.mxu0 %v1145
    %v1333 = vpop.f32.mrf.mxu0
    %v1334 = vadd.f32 0.0, %v1333
    %1335 = vmatmul.f32.gmra.mxu0 %v711
    %v1336 = vpop.f32.mrf.mxu0
    %v1337 = vadd.f32 0.0, %v1336
    %1338 = vmatmul.f32.gmra.mxu0 %v711
    %v1339 = vpop.f32.mrf.mxu0
    %v1340 = vadd.f32 0.0, %v1339
    %1341 = vdwg.mxu0
    %v1342 = vadd.f32 %v1230, %v1295
    %v1343 = vadd.f32 %v1233, %v1298
    %v1344 = vadd.f32 %v1236, %v1301
    %v1345 = vadd.f32 %v1239, %v1304
    %v1346 = vadd.f32 %v1242, %v1307
    %v1347 = vadd.f32 %v1245, %v1310
    %v1348 = vadd.f32 %v1248, %v1313
    %v1349 = vadd.f32 %v1251, %v1316
    %v1350 = vadd.f32 %v1254, %v1319
    %v1351 = vadd.f32 %v1257, %v1322
    %v1352 = vadd.f32 %v1260, %v1325
    %v1353 = vadd.f32 %v1263, %v1328
    %v1354 = vadd.f32 %v1266, %v1331
    %v1355 = vadd.f32 %v1269, %v1334
    %v1356 = vadd.f32 %v1272, %v1337
    %v1357 = vadd.f32 %v1275, %v1340
    %v1358 = vld [vmem:[%s5] sm:$0x1]
    %v1360 = vperm.slane %v1358, 0
    %v1362 = vadd.f32 %v1342, %v1360
    %v1363 = vadd.f32 %v1343, %v1360
    %v1364 = vadd.f32 %v1344, %v1360
    %v1365 = vadd.f32 %v1345, %v1360
    %v1366 = vadd.f32 %v1346, %v1360
    %v1367 = vadd.f32 %v1347, %v1360
    %v1368 = vadd.f32 %v1348, %v1360
    %v1369 = vadd.f32 %v1349, %v1360
    %v1370 = vadd.f32 %v1350, %v1360
    %v1371 = vadd.f32 %v1351, %v1360
    %v1372 = vadd.f32 %v1352, %v1360
    %v1373 = vadd.f32 %v1353, %v1360
    %v1374 = vadd.f32 %v1354, %v1360
    %v1375 = vadd.f32 %v1355, %v1360
    %v1376 = vadd.f32 %v1356, %v1360
    %v1377 = vadd.f32 %v1357, %v1360
    %v1378 = vmax.f32 %v1362, 0.0
    %v1379 = vmax.f32 %v1363, 0.0
    %v1380 = vmax.f32 %v1364, 0.0
    %v1381 = vmax.f32 %v1365, 0.0
    %v1382 = vmax.f32 %v1366, 0.0
    %v1383 = vmax.f32 %v1367, 0.0
    %v1384 = vmax.f32 %v1368, 0.0
    %v1385 = vmax.f32 %v1369, 0.0
    %v1386 = vmax.f32 %v1370, 0.0
    %v1387 = vmax.f32 %v1371, 0.0
    %v1388 = vmax.f32 %v1372, 0.0
    %v1389 = vmax.f32 %v1373, 0.0
    %v1390 = vmax.f32 %v1374, 0.0
    %v1391 = vmax.f32 %v1375, 0.0
    %v1392 = vmax.f32 %v1376, 0.0
    %v1393 = vmax.f32 %v1377, 0.0
    %vm1394 = vcmask 523264
    %v1395 = vsel %vm1394, %v1378, -inf
    %v1396 = vsel %vm1394, %v1380, -inf
    %v1397 = vmax.f32 %v1395, %v1396
    %v1398 = vsel %vm1394, %v1379, -inf
    %v1399 = vsel %vm1394, %v1381, -inf
    %v1400 = vmax.f32 %v1398, %v1399
    %v1401 = vsel %vm1394, %v1382, -inf
    %v1402 = vsel %vm1394, %v1384, -inf
    %v1403 = vmax.f32 %v1401, %v1402
    %v1404 = vsel %vm1394, %v1383, -inf
    %v1405 = vsel %vm1394, %v1385, -inf
    %v1406 = vmax.f32 %v1404, %v1405
    %v1407 = vsel %vm1394, %v1386, -inf
    %v1408 = vsel %vm1394, %v1388, -inf
    %v1409 = vmax.f32 %v1407, %v1408
    %v1410 = vsel %vm1394, %v1387, -inf
    %v1411 = vsel %vm1394, %v1389, -inf
    %v1412 = vmax.f32 %v1410, %v1411
    %v1413 = vsel %vm1394, %v1390, -inf
    %v1414 = vsel %vm1394, %v1392, -inf
    %v1415 = vmax.f32 %v1413, %v1414
    %v1416 = vsel %vm1394, %v1391, -inf
    %v1417 = vsel %vm1394, %v1393, -inf
    %v1418 = vmax.f32 %v1416, %v1417
    %v1419 = vld [vmem:[#allocation7] sm:$0xff]
    %v1420 = vld [vmem:[#allocation7 + $0x8] sm:$0xff]
    %v1421 = vld [vmem:[#allocation7 + $0x10] sm:$0xff]
    %v1422 = vld [vmem:[#allocation7 + $0x18] sm:$0xff]
    %v1423 = vld [vmem:[#allocation7 + $0x20] sm:$0xff]
    %v1424 = vld [vmem:[#allocation7 + $0x28] sm:$0xff]
    %v1425 = vld [vmem:[#allocation7 + $0x30] sm:$0xff]
    %v1426 = vld [vmem:[#allocation7 + $0x38] sm:$0xff]
    %v1427 = vld [vmem:[#allocation7 + $0x40] sm:$0xff]
    %v1428 = vld [vmem:[#allocation7 + $0x48] sm:$0xff]
    %v1429 = vld [vmem:[#allocation7 + $0x50] sm:$0xff]
    %v1430 = vld [vmem:[#allocation7 + $0x58] sm:$0xff]
    %v1431 = vld [vmem:[#allocation7 + $0x60] sm:$0xff]
    %v1432 = vld [vmem:[#allocation7 + $0x68] sm:$0xff]
    %v1433 = vld [vmem:[#allocation7 + $0x70] sm:$0xff]
    %v1434 = vld [vmem:[#allocation7 + $0x78] sm:$0xff]
    %v1435 = vld [vmem:[#allocation7 + $0x80] sm:$0xff]
    %v1436 = vld [vmem:[#allocation7 + $0x88] sm:$0xff]
    %v1437 = vld [vmem:[#allocation7 + $0x90] sm:$0xff]
    %v1438 = vld [vmem:[#allocation7 + $0x98] sm:$0xff]
    %v1439 = vld [vmem:[#allocation7 + $0xa0] sm:$0xff]
    %v1440 = vld [vmem:[#allocation7 + $0xa8] sm:$0xff]
    %v1441 = vld [vmem:[#allocation7 + $0xb0] sm:$0xff]
    %v1442 = vld [vmem:[#allocation7 + $0xb8] sm:$0xff]
    %v1444 = vsel %vm1394, %v1397, 0
    %v1447 = vsel %vm1394, %v1400, 0
    %v1450 = vsel %vm1394, %v1403, 0
    %v1453 = vsel %vm1394, %v1406, 0
    %v1456 = vsel %vm1394, %v1409, 0
    %v1459 = vsel %vm1394, %v1412, 0
    %v1462 = vsel %vm1394, %v1415, 0
    %v1465 = vsel %vm1394, %v1418, 0
    %1467 = vmatpush.msra.mxu0 0.0
    %1468 = vmatpush.msra.mxu0 0.0
    %1469 = vmatpush.msra.mxu0 0.0
    %1470 = vmatpush.msra.mxu0 0.0
    %1471 = vmatpush.msra.mxu0 0.0
    %1472 = vmatpush.msra.mxu0 0.0
    %1473 = vmatpush.msra.mxu0 0.0
    %1474 = vmatpush.msra.mxu0 0.0
    %1475 = vmatpush.msra.mxu0 %v1434
    %1476 = vmatpush.msra.mxu0 %v1433
    %1477 = vmatpush.msra.mxu0 %v1432
    %1478 = vmatpush.msra.mxu0 %v1431
    %1479 = vmatpush.msra.mxu0 %v1430
    %1480 = vmatpush.msra.mxu0 %v1429
    %1481 = vmatpush.msra.mxu0 %v1428
    %1482 = vmatpush.msra.mxu0 %v1427
    %1483 = vmatmul.f32.gmra.mxu0 %v1444
    %v1484 = vpop.f32.mrf.mxu0
    %v1485 = vadd.f32 0.0, %v1484
    %1486 = vmatmul.f32.gmra.mxu0 %v1447
    %v1487 = vpop.f32.mrf.mxu0
    %v1488 = vadd.f32 0.0, %v1487
    %1489 = vmatmul.f32.gmra.mxu0 %v1450
    %v1490 = vpop.f32.mrf.mxu0
    %v1491 = vadd.f32 0.0, %v1490
    %1492 = vmatmul.f32.gmra.mxu0 %v1453
    %v1493 = vpop.f32.mrf.mxu0
    %v1494 = vadd.f32 0.0, %v1493
    %1495 = vmatmul.f32.gmra.mxu0 %v1456
    %v1496 = vpop.f32.mrf.mxu0
    %v1497 = vadd.f32 0.0, %v1496
    %1498 = vmatmul.f32.gmra.mxu0 %v1459
    %v1499 = vpop.f32.mrf.mxu0
    %v1500 = vadd.f32 0.0, %v1499
    %1501 = vmatmul.f32.gmra.mxu0 %v1462
    %v1502 = vpop.f32.mrf.mxu0
    %v1503 = vadd.f32 0.0, %v1502
    %1504 = vmatmul.f32.gmra.mxu0 %v1465
    %v1505 = vpop.f32.mrf.mxu0
    %v1506 = vadd.f32 0.0, %v1505
    %1507 = vdwg.mxu0
    %v1508 = vsel %vm1394, 0.0, 0
    %1510 = vmatpush.msra.mxu0 0.0
    %1511 = vmatpush.msra.mxu0 0.0
    %1512 = vmatpush.msra.mxu0 0.0
    %1513 = vmatpush.msra.mxu0 0.0
    %1514 = vmatpush.msra.mxu0 0.0
    %1515 = vmatpush.msra.mxu0 0.0
    %1516 = vmatpush.msra.mxu0 0.0
    %1517 = vmatpush.msra.mxu0 0.0
    %1518 = vmatpush.msra.mxu0 %v1426
    %1519 = vmatpush.msra.mxu0 %v1425
    %1520 = vmatpush.msra.mxu0 %v1424
    %1521 = vmatpush.msra.mxu0 %v1423
    %1522 = vmatpush.msra.mxu0 %v1422
    %1523 = vmatpush.msra.mxu0 %v1421
    %1524 = vmatpush.msra.mxu0 %v1420
    %1525 = vmatpush.msra.mxu0 %v1419
    %1526 = vmatmul.f32.gmra.mxu0 %v1508
    %v1527 = vpop.f32.mrf.mxu0
    %v1528 = vadd.f32 %v1485, %v1527
    %1529 = vmatmul.f32.gmra.mxu0 %v1508
    %v1530 = vpop.f32.mrf.mxu0
    %v1531 = vadd.f32 %v1488, %v1530
    %1532 = vmatmul.f32.gmra.mxu0 %v1444
    %v1533 = vpop.f32.mrf.mxu0
    %v1534 = vadd.f32 %v1491, %v1533
    %1535 = vmatmul.f32.gmra.mxu0 %v1447
    %v1536 = vpop.f32.mrf.mxu0
    %v1537 = vadd.f32 %v1494, %v1536
    %1538 = vmatmul.f32.gmra.mxu0 %v1450
    %v1539 = vpop.f32.mrf.mxu0
    %v1540 = vadd.f32 %v1497, %v1539
    %1541 = vmatmul.f32.gmra.mxu0 %v1453
    %v1542 = vpop.f32.mrf.mxu0
    %v1543 = vadd.f32 %v1500, %v1542
    %1544 = vmatmul.f32.gmra.mxu0 %v1456
    %v1545 = vpop.f32.mrf.mxu0
    %v1546 = vadd.f32 %v1503, %v1545
    %1547 = vmatmul.f32.gmra.mxu0 %v1459
    %v1548 = vpop.f32.mrf.mxu0
    %v1549 = vadd.f32 %v1506, %v1548
    %1550 = vdwg.mxu0
    %1551 = vmatpush.msra.mxu0 0.0
    %1552 = vmatpush.msra.mxu0 0.0
    %1553 = vmatpush.msra.mxu0 0.0
    %1554 = vmatpush.msra.mxu0 0.0
    %1555 = vmatpush.msra.mxu0 0.0
    %1556 = vmatpush.msra.mxu0 0.0
    %1557 = vmatpush.msra.mxu0 0.0
    %1558 = vmatpush.msra.mxu0 0.0
    %1559 = vmatpush.msra.mxu0 %v1442
    %1560 = vmatpush.msra.mxu0 %v1441
    %1561 = vmatpush.msra.mxu0 %v1440
    %1562 = vmatpush.msra.mxu0 %v1439
    %1563 = vmatpush.msra.mxu0 %v1438
    %1564 = vmatpush.msra.mxu0 %v1437
    %1565 = vmatpush.msra.mxu0 %v1436
    %1566 = vmatpush.msra.mxu0 %v1435
    %1567 = vmatmul.f32.gmra.mxu0 %v1450
    %v1568 = vpop.f32.mrf.mxu0
    %v1569 = vadd.f32 0.0, %v1568
    %1570 = vmatmul.f32.gmra.mxu0 %v1453
    %v1571 = vpop.f32.mrf.mxu0
    %v1572 = vadd.f32 0.0, %v1571
    %1573 = vmatmul.f32.gmra.mxu0 %v1456
    %v1574 = vpop.f32.mrf.mxu0
    %v1575 = vadd.f32 0.0, %v1574
    %1576 = vmatmul.f32.gmra.mxu0 %v1459
    %v1577 = vpop.f32.mrf.mxu0
    %v1578 = vadd.f32 0.0, %v1577
    %1579 = vmatmul.f32.gmra.mxu0 %v1462
    %v1580 = vpop.f32.mrf.mxu0
    %v1581 = vadd.f32 0.0, %v1580
    %1582 = vmatmul.f32.gmra.mxu0 %v1465
    %v1583 = vpop.f32.mrf.mxu0
    %v1584 = vadd.f32 0.0, %v1583
    %1585 = vmatmul.f32.gmra.mxu0 %v1508
    %v1586 = vpop.f32.mrf.mxu0
    %v1587 = vadd.f32 0.0, %v1586
    %1588 = vmatmul.f32.gmra.mxu0 %v1508
    %v1589 = vpop.f32.mrf.mxu0
    %v1590 = vadd.f32 0.0, %v1589
    %1591 = vdwg.mxu0
    %v1592 = vadd.f32 %v1528, %v1569
    %v1593 = vadd.f32 %v1531, %v1572
    %v1594 = vadd.f32 %v1534, %v1575
    %v1595 = vadd.f32 %v1537, %v1578
    %v1596 = vadd.f32 %v1540, %v1581
    %v1597 = vadd.f32 %v1543, %v1584
    %v1598 = vadd.f32 %v1546, %v1587
    %v1599 = vadd.f32 %v1549, %v1590
    %v1600 = vld [vmem:[%s7] sm:$0x1]
    %v1602 = vperm.slane %v1600, 0
    %v1604 = vadd.f32 %v1592, %v1602
    %v1605 = vadd.f32 %v1593, %v1602
    %v1606 = vadd.f32 %v1594, %v1602
    %v1607 = vadd.f32 %v1595, %v1602
    %v1608 = vadd.f32 %v1596, %v1602
    %v1609 = vadd.f32 %v1597, %v1602
    %v1610 = vadd.f32 %v1598, %v1602
    %v1611 = vadd.f32 %v1599, %v1602
    %v1612 = vmax.f32 %v1604, 0.0
    %v1613 = vmax.f32 %v1605, 0.0
    %v1614 = vmax.f32 %v1606, 0.0
    %v1615 = vmax.f32 %v1607, 0.0
    %v1616 = vmax.f32 %v1608, 0.0
    %v1617 = vmax.f32 %v1609, 0.0
    %v1618 = vmax.f32 %v1610, 0.0
    %v1619 = vmax.f32 %v1611, 0.0
    %v1620 = vmax.f32 %v1612, %v1616
    %v1621 = vmax.f32 %v1614, %v1618
    %v1622 = vmax.f32 %v1620, %v1621
    %v1623 = vmax.f32 %v1613, %v1617
    %v1624 = vmax.f32 %v1615, %v1619
    %v1625 = vmax.f32 %v1623, %v1624
    %v1626 = vld [vmem:[%s8] sm:$0xff]
    %v1627 = vld [vmem:[%s8 + $0x8] sm:$0xff]
    %v1628 = vld [vmem:[%s8 + $0x10] sm:$0xff]
    %v1629 = vld [vmem:[%s8 + $0x18] sm:$0xff]
    %v1630 = vld [vmem:[%s8 + $0x20] sm:$0xff]
    %v1631 = vld [vmem:[%s8 + $0x28] sm:$0xff]
    %v1632 = vld [vmem:[%s8 + $0x30] sm:$0xff]
    %v1633 = vld [vmem:[%s8 + $0x38] sm:$0xff]
    %v1634 = vld [vmem:[%s8 + $0x40] sm:$0xff]
    %v1635 = vld [vmem:[%s8 + $0x48] sm:$0xff]
    %v1636 = vld [vmem:[%s8 + $0x50] sm:$0xff]
    %v1637 = vld [vmem:[%s8 + $0x58] sm:$0xff]
    %v1638 = vld [vmem:[%s8 + $0x60] sm:$0xff]
    %v1639 = vld [vmem:[%s8 + $0x68] sm:$0xff]
    %v1640 = vld [vmem:[%s8 + $0x70] sm:$0xff]
    %v1641 = vld [vmem:[%s8 + $0x78] sm:$0xff]
    %v1642 = vld [vmem:[%s9] sm:$0x1]
    %v1644 = vperm.slane %v1642, 0
    %1646 = vmatpush.msra.mxu0 %v1641
    %1647 = vmatpush.msra.mxu0 %v1640
    %1648 = vmatpush.msra.mxu0 %v1639
    %1649 = vmatpush.msra.mxu0 %v1638
    %1650 = vmatpush.msra.mxu0 %v1637
    %1651 = vmatpush.msra.mxu0 %v1636
    %1652 = vmatpush.msra.mxu0 %v1635
    %1653 = vmatpush.msra.mxu0 %v1634
    %1654 = vmatpush.msra.mxu0 %v1633
    %1655 = vmatpush.msra.mxu0 %v1632
    %1656 = vmatpush.msra.mxu0 %v1631
    %1657 = vmatpush.msra.mxu0 %v1630
    %1658 = vmatpush.msra.mxu0 %v1629
    %1659 = vmatpush.msra.mxu0 %v1628
    %1660 = vmatpush.msra.mxu0 %v1627
    %1661 = vmatpush.msra.mxu0 %v1626
    %1662 = vmatmul.f32.gmra.mxu0 %v1622
    %v1663 = vpop.f32.mrf.mxu0
    %v1664 = vadd.f32 %v1644, %v1663
    %1665 = vmatmul.f32.gmra.mxu0 %v1625
    %v1666 = vpop.f32.mrf.mxu0
    %v1667 = vadd.f32 %v1644, %v1666
    %1668 = vdwg.mxu0
    %1669 = vst [vmem:[#allocation8] sm:$0xff] %v1664
    %1670 = vst [vmem:[#allocation8 + $0x8] sm:$0xff] %v1667
    // Predicated region
    $region54: #{tpu_custom_call.1} parent=1 // pred_check
      _
    $region55: #{tpu_custom_call.1} parent=1 // pred_check_branch
      %1672 = sbr.rel (0) target = $region57
    $region56: #{tpu_custom_call.1} parent=1 // pred_region
      %1674 = vsyncadd [#allocation4], 0
      %s1675 = sshll.u32 [#allocation8], 4
      %s1676 = int_to_ptr.vmem [resolvable:$true] %s1675
      %s1677 = sshll.u32 %s10, 4
      %s1678 = int_to_ptr.hbm [resolvable:$true] %s1677
      %1683 = dma.vmem_to_hbm [thread:$0]  %s1676, 256, %s1678, [#allocation4], 128, 128, 8
    $region57: #{tpu_custom_call.1} parent=1 // pred_fallthru
      _
    // Predicated region
    $region58: #{tpu_custom_call.1} parent=1 // pred_check
      _
    $region59: #{tpu_custom_call.1} parent=1 // pred_check_branch
      %1685 = sbr.rel (0) target = $region61
    $region60: #{tpu_custom_call.1} parent=1 // pred_region
      %1687 = dma.done [#allocation4], 256
    $region61: #{tpu_custom_call.1} parent=1 // pred_fallthru
      _
    %1688 = vsyncpa [#allocation3], 1
    %1689 = vsyncpa [#allocation6], 1
    %1690 = vsyncpa [#allocation4], 1

</llo_original>
